<compile_context>
chip_gen: v7x
topology: tpu7x:2x2x1
jax: 0.10.0
libtpu: 0.0.40
codegen_flags: <defaults>
</compile_context>

<pallas_src>
import jax
import jax.numpy as jnp
from jax.experimental import pallas as pl
from jax.experimental.pallas import tpu as pltpu


_LANE = 128      # TPU lane width; pad final output dim to this for unmasked stores.
_SUBLANE = 8     # f32 sublane count.


def _round_up(n: int, m: int) -> int:
    return ((n + m - 1) // m) * m


def _mlp_kernel(x_ref,
                w1_ref, b1_ref,
                w2_ref, b2_ref,
                w3_ref, b3_ref,
                w4_ref, b4_ref,
                o_ref):
    """Fused 4-layer MLP: three (matmul + bias + ReLU) stages + final matmul + bias.

    Matmuls take bf16 operands on the MXU with f32 accumulation; bias-add and
    ReLU run in f32 on the VPU, then the activation is re-packed to bf16 for
    the next MXU stage.
    """
    h = jnp.dot(x_ref[...], w1_ref[...], preferred_element_type=jnp.float32)
    h = jnp.maximum(h + b1_ref[...], 0.0).astype(jnp.bfloat16)

    h = jnp.dot(h, w2_ref[...], preferred_element_type=jnp.float32)
    h = jnp.maximum(h + b2_ref[...], 0.0).astype(jnp.bfloat16)

    h = jnp.dot(h, w3_ref[...], preferred_element_type=jnp.float32)
    h = jnp.maximum(h + b3_ref[...], 0.0).astype(jnp.bfloat16)

    h = jnp.dot(h, w4_ref[...], preferred_element_type=jnp.float32)
    o_ref[...] = (h + b4_ref[...]).astype(o_ref.dtype)


def play_network_forward(x, params, *, block_b=None):
    """Run PlayNetwork.forward via a single fused pallas_call.

    x:      (B, n_obs) float32 / bfloat16
    params: dict from prepare_params(): w1..w4 bf16 stored (in, out) (w4 padded
            to a multiple of 128 out-features), b1..b4 f32 (1, out),
            plus "n_actions" (true logit count).
    """
    B, n_obs = x.shape
    n_out_padded = params["w4"].shape[1]
    n_actions = params["n_actions"]

    if block_b is None:
        if B <= 16:
            # Single grid step: the whole (tiny) batch is one tile.
            block_b = B
        else:
            # >= 2 grid steps so v7x can shard the batch across both TCs;
            # 128-512 rows keeps live f32 intermediates modest and amortizes
            # the ~0.35us/step grid overhead. Multiple of 8 sublanes.
            block_b = min(512, max(16, _round_up(B // 2, _SUBLANE)))
    block_b = min(block_b, B)
    grid = (pl.cdiv(B, block_b),)

    # bf16 activations into the MXU; also halves x DMA bytes for large B.
    x = x.astype(jnp.bfloat16)

    x_spec = pl.BlockSpec((block_b, n_obs), lambda i: (i, 0))
    out_spec = pl.BlockSpec((block_b, n_out_padded), lambda i: (i, 0))
    # Weights/biases: whole-array VMEM residency (no per-step double-buffering).
    vmem_spec = pl.BlockSpec(memory_space=pltpu.MemorySpace.VMEM)

    in_specs = [x_spec] + [vmem_spec] * 8

    out_padded = pl.pallas_call(
        _mlp_kernel,
        out_shape=jax.ShapeDtypeStruct((B, n_out_padded), jnp.float32),
        grid_spec=pltpu.PrefetchScalarGridSpec(
            num_scalar_prefetch=0,
            grid=grid,
            in_specs=in_specs,
            out_specs=out_spec,
        ),
        compiler_params=pltpu.CompilerParams(
            dimension_semantics=("parallel",),
            vmem_limit_bytes=32 * 1024 * 1024,
        ),
    )(x,
      params["w1"], params["b1"],
      params["w2"], params["b2"],
      params["w3"], params["b3"],
      params["w4"], params["b4"])

    # Slice off the lane padding of the final layer.
    return out_padded[:, :n_actions]


def init_params(key, n_obs, n_actions, hidden=512):
    """Deterministic synthetic f32 master parameters (torch-Linear-style init).

    Weights are stored pre-transposed as (in_features, out_features) so the
    kernel computes y = x @ W + b (== torch's x @ W_t.T + b).
    """
    dims = [(n_obs, hidden), (hidden, hidden), (hidden, hidden), (hidden, n_actions)]
    params = {}
    for idx, (fan_in, fan_out) in enumerate(dims, start=1):
        key, kw, kb = jax.random.split(key, 3)
        bound = 1.0 / (fan_in ** 0.5)
        params[f"w{idx}"] = jax.random.uniform(
            kw, (fan_in, fan_out), jnp.float32, minval=-bound, maxval=bound)
        params[f"b{idx}"] = jax.random.uniform(
            kb, (1, fan_out), jnp.float32, minval=-bound, maxval=bound)
    return params


def prepare_params(master, n_actions, lane=_LANE):
    """Kernel-ready params: bf16 weights, f32 biases, final layer lane-padded."""
    p = {}
    for i in (1, 2, 3):
        p[f"w{i}"] = master[f"w{i}"].astype(jnp.bfloat16)
        p[f"b{i}"] = master[f"b{i}"].astype(jnp.float32)
    n_pad = _round_up(n_actions, lane)
    w4, b4 = master["w4"], master["b4"]
    if n_pad != n_actions:
        w4 = jnp.pad(w4, ((0, 0), (0, n_pad - n_actions)))
        b4 = jnp.pad(b4, ((0, 0), (0, n_pad - n_actions)))
    p["w4"] = w4.astype(jnp.bfloat16)
    p["b4"] = b4.astype(jnp.float32)
    p["n_actions"] = n_actions
    return p


def reference_forward(x, master):
    """Plain-JAX reference matching the kernel's numerics (bf16 MXU, f32 acc)."""
    def mm(a, w):
        return jnp.dot(a.astype(jnp.bfloat16), w.astype(jnp.bfloat16),
                       preferred_element_type=jnp.float32)
    h = jnp.maximum(mm(x, master["w1"]) + master["b1"], 0.0)
    h = jnp.maximum(mm(h, master["w2"]) + master["b2"], 0.0)
    h = jnp.maximum(mm(h, master["w3"]) + master["b3"], 0.0)
    return mm(h, master["w4"]) + master["b4"]


if __name__ == "__main__":
    # Small shapes consistent with the module: batch=8 observations of size 64,
    # 32 discrete actions.
    B, N_OBS, N_ACTIONS = 8, 64, 32

    key = jax.random.PRNGKey(0)
    key, kx = jax.random.split(key)
    x = jax.random.normal(kx, (B, N_OBS), jnp.float32)
    master = init_params(key, N_OBS, N_ACTIONS)
    params = prepare_params(master, N_ACTIONS)

    out = play_network_forward(x, params)
    out = jax.block_until_ready(out)

    ref = reference_forward(x, master)
    assert out.shape == (B, N_ACTIONS)
    assert jnp.allclose(out, ref, atol=2e-2, rtol=2e-2), \
        float(jnp.max(jnp.abs(out - ref)))

    print("KERNEL_OK")
</pallas_src>

<mosaic_0001>
module attributes {stable_mosaic.version = 11 : i64} {
  func.func @_mlp_kernel(%arg0: i32, %arg1: memref<8x64xbf16, #tpu.memory_space<vmem>>, %arg2: memref<64x512xbf16, #tpu.memory_space<vmem>>, %arg3: memref<1x512xf32, #tpu.memory_space<vmem>>, %arg4: memref<512x512xbf16, #tpu.memory_space<vmem>>, %arg5: memref<1x512xf32, #tpu.memory_space<vmem>>, %arg6: memref<512x512xbf16, #tpu.memory_space<vmem>>, %arg7: memref<1x512xf32, #tpu.memory_space<vmem>>, %arg8: memref<512x128xbf16, #tpu.memory_space<vmem>>, %arg9: memref<1x128xf32, #tpu.memory_space<vmem>>, %arg10: memref<8x128xf32, #tpu.memory_space<vmem>>) attributes {dimension_semantics = [#tpu.dimension_semantics<parallel>], iteration_bounds = array<i64: 1>, scalar_prefetch = 0 : i64, scratch_operands = 0 : i64, tpu.core_type = #tpu.core_type<tc>, window_params = [{transform_indices = @transform_0, window_bounds = array<i64: 8, 64>}, {pipeline_mode = #tpu.pipeline_mode<synchronous>, transform_indices = @transform_1, window_bounds = array<i64: 64, 512>}, {pipeline_mode = #tpu.pipeline_mode<synchronous>, transform_indices = @transform_2, window_bounds = array<i64: 1, 512>}, {pipeline_mode = #tpu.pipeline_mode<synchronous>, transform_indices = @transform_3, window_bounds = array<i64: 512, 512>}, {pipeline_mode = #tpu.pipeline_mode<synchronous>, transform_indices = @transform_4, window_bounds = array<i64: 1, 512>}, {pipeline_mode = #tpu.pipeline_mode<synchronous>, transform_indices = @transform_5, window_bounds = array<i64: 512, 512>}, {pipeline_mode = #tpu.pipeline_mode<synchronous>, transform_indices = @transform_6, window_bounds = array<i64: 1, 512>}, {pipeline_mode = #tpu.pipeline_mode<synchronous>, transform_indices = @transform_7, window_bounds = array<i64: 512, 128>}, {pipeline_mode = #tpu.pipeline_mode<synchronous>, transform_indices = @transform_8, window_bounds = array<i64: 1, 128>}, {transform_indices = @transform_9, window_bounds = array<i64: 8, 128>}]} {
    %c0 = arith.constant 0 : index
    %c0_0 = arith.constant 0 : index
    %0 = vector.load %arg1[%c0, %c0_0] : memref<8x64xbf16, #tpu.memory_space<vmem>>, vector<8x64xbf16>
    %c0_1 = arith.constant 0 : index
    %c0_2 = arith.constant 0 : index
    %1 = vector.load %arg2[%c0_1, %c0_2] : memref<64x512xbf16, #tpu.memory_space<vmem>>, vector<64x512xbf16>
    %cst = arith.constant dense<0.000000e+00> : vector<8x512xf32>
    %2 = tpu.matmul %0, %1, %cst {dimension_numbers = #tpu.dot_dimension_numbers<[1], [0], [0], [1], [0, 0, 1, 1], [], []>} : vector<8x64xbf16>, vector<64x512xbf16>, vector<8x512xf32> -> vector<8x512xf32>
    %c0_3 = arith.constant 0 : index
    %c0_4 = arith.constant 0 : index
    %3 = vector.load %arg3[%c0_3, %c0_4] : memref<1x512xf32, #tpu.memory_space<vmem>>, vector<1x512xf32>
    %4 = vector.broadcast %3 : vector<1x512xf32> to vector<8x512xf32>
    %5 = arith.addf %2, %4 : vector<8x512xf32>
    %cst_5 = arith.constant 0.000000e+00 : f32
    %6 = vector.broadcast %cst_5 : f32 to vector<8x512xf32>
    %7 = arith.maximumf %5, %6 : vector<8x512xf32>
    %8 = arith.truncf %7 : vector<8x512xf32> to vector<8x512xbf16>
    %c0_6 = arith.constant 0 : index
    %c0_7 = arith.constant 0 : index
    %9 = vector.load %arg4[%c0_6, %c0_7] : memref<512x512xbf16, #tpu.memory_space<vmem>>, vector<512x512xbf16>
    %cst_8 = arith.constant dense<0.000000e+00> : vector<8x512xf32>
    %10 = tpu.matmul %8, %9, %cst_8 {dimension_numbers = #tpu.dot_dimension_numbers<[1], [0], [0], [1], [0, 0, 1, 1], [], []>} : vector<8x512xbf16>, vector<512x512xbf16>, vector<8x512xf32> -> vector<8x512xf32>
    %c0_9 = arith.constant 0 : index
    %c0_10 = arith.constant 0 : index
    %11 = vector.load %arg5[%c0_9, %c0_10] : memref<1x512xf32, #tpu.memory_space<vmem>>, vector<1x512xf32>
    %12 = vector.broadcast %11 : vector<1x512xf32> to vector<8x512xf32>
    %13 = arith.addf %10, %12 : vector<8x512xf32>
    %cst_11 = arith.constant 0.000000e+00 : f32
    %14 = vector.broadcast %cst_11 : f32 to vector<8x512xf32>
    %15 = arith.maximumf %13, %14 : vector<8x512xf32>
    %16 = arith.truncf %15 : vector<8x512xf32> to vector<8x512xbf16>
    %c0_12 = arith.constant 0 : index
    %c0_13 = arith.constant 0 : index
    %17 = vector.load %arg6[%c0_12, %c0_13] : memref<512x512xbf16, #tpu.memory_space<vmem>>, vector<512x512xbf16>
    %cst_14 = arith.constant dense<0.000000e+00> : vector<8x512xf32>
    %18 = tpu.matmul %16, %17, %cst_14 {dimension_numbers = #tpu.dot_dimension_numbers<[1], [0], [0], [1], [0, 0, 1, 1], [], []>} : vector<8x512xbf16>, vector<512x512xbf16>, vector<8x512xf32> -> vector<8x512xf32>
    %c0_15 = arith.constant 0 : index
    %c0_16 = arith.constant 0 : index
    %19 = vector.load %arg7[%c0_15, %c0_16] : memref<1x512xf32, #tpu.memory_space<vmem>>, vector<1x512xf32>
    %20 = vector.broadcast %19 : vector<1x512xf32> to vector<8x512xf32>
    %21 = arith.addf %18, %20 : vector<8x512xf32>
    %cst_17 = arith.constant 0.000000e+00 : f32
    %22 = vector.broadcast %cst_17 : f32 to vector<8x512xf32>
    %23 = arith.maximumf %21, %22 : vector<8x512xf32>
    %24 = arith.truncf %23 : vector<8x512xf32> to vector<8x512xbf16>
    %c0_18 = arith.constant 0 : index
    %c0_19 = arith.constant 0 : index
    %25 = vector.load %arg8[%c0_18, %c0_19] : memref<512x128xbf16, #tpu.memory_space<vmem>>, vector<512x128xbf16>
    %cst_20 = arith.constant dense<0.000000e+00> : vector<8x128xf32>
    %26 = tpu.matmul %24, %25, %cst_20 {dimension_numbers = #tpu.dot_dimension_numbers<[1], [0], [0], [1], [0, 0, 1, 1], [], []>} : vector<8x512xbf16>, vector<512x128xbf16>, vector<8x128xf32> -> vector<8x128xf32>
    %c0_21 = arith.constant 0 : index
    %c0_22 = arith.constant 0 : index
    %27 = vector.load %arg9[%c0_21, %c0_22] : memref<1x128xf32, #tpu.memory_space<vmem>>, vector<1x128xf32>
    %28 = vector.broadcast %27 : vector<1x128xf32> to vector<8x128xf32>
    %29 = arith.addf %26, %28 : vector<8x128xf32>
    %c0_23 = arith.constant 0 : index
    %c0_24 = arith.constant 0 : index
    %30 = vector.load %arg10[%c0_23, %c0_24] : memref<8x128xf32, #tpu.memory_space<vmem>>, vector<8x128xf32>
    tpu.vector_store %arg10[%c0_23, %c0_24], %29 {strides = array<i32>} : memref<8x128xf32, #tpu.memory_space<vmem>>, vector<8x128xf32>,
    return
  }
  func.func @transform_0(%arg0: i32) -> (i32, i32) {
    %c0_i32 = arith.constant 0 : i32
    %c0_i32_0 = arith.constant 0 : i32
    return %arg0, %c0_i32 : i32, i32
  }
  func.func @transform_1(%arg0: i32) -> (i32, i32) {
    %c0_i32 = arith.constant 0 : i32
    %c0_i32_0 = arith.constant 0 : i32
    %c0_i32_1 = arith.constant 0 : i32
    return %c0_i32, %c0_i32_0 : i32, i32
  }
  func.func @transform_2(%arg0: i32) -> (i32, i32) {
    %c0_i32 = arith.constant 0 : i32
    %c0_i32_0 = arith.constant 0 : i32
    %c0_i32_1 = arith.constant 0 : i32
    return %c0_i32, %c0_i32_0 : i32, i32
  }
  func.func @transform_3(%arg0: i32) -> (i32, i32) {
    %c0_i32 = arith.constant 0 : i32
    %c0_i32_0 = arith.constant 0 : i32
    %c0_i32_1 = arith.constant 0 : i32
    return %c0_i32, %c0_i32_0 : i32, i32
  }
  func.func @transform_4(%arg0: i32) -> (i32, i32) {
    %c0_i32 = arith.constant 0 : i32
    %c0_i32_0 = arith.constant 0 : i32
    %c0_i32_1 = arith.constant 0 : i32
    return %c0_i32, %c0_i32_0 : i32, i32
  }
  func.func @transform_5(%arg0: i32) -> (i32, i32) {
    %c0_i32 = arith.constant 0 : i32
    %c0_i32_0 = arith.constant 0 : i32
    %c0_i32_1 = arith.constant 0 : i32
    return %c0_i32, %c0_i32_0 : i32, i32
  }
  func.func @transform_6(%arg0: i32) -> (i32, i32) {
    %c0_i32 = arith.constant 0 : i32
    %c0_i32_0 = arith.constant 0 : i32
    %c0_i32_1 = arith.constant 0 : i32
    return %c0_i32, %c0_i32_0 : i32, i32
  }
  func.func @transform_7(%arg0: i32) -> (i32, i32) {
    %c0_i32 = arith.constant 0 : i32
    %c0_i32_0 = arith.constant 0 : i32
    %c0_i32_1 = arith.constant 0 : i32
    return %c0_i32, %c0_i32_0 : i32, i32
  }
  func.func @transform_8(%arg0: i32) -> (i32, i32) {
    %c0_i32 = arith.constant 0 : i32
    %c0_i32_0 = arith.constant 0 : i32
    %c0_i32_1 = arith.constant 0 : i32
    return %c0_i32, %c0_i32_0 : i32, i32
  }
  func.func @transform_9(%arg0: i32) -> (i32, i32) {
    %c0_i32 = arith.constant 0 : i32
    %c0_i32_0 = arith.constant 0 : i32
    return %arg0, %c0_i32 : i32, i32
  }
}

</mosaic_0001>

<llo_original>
// kernel: tpu_custom_call.1
$region0: #{tpu_custom_call.1}
  #allocation0 [shape = 'u32[]', space=smem, size = 0x4, offset = 0x4, fixed_abs, tag = 'smem constant byte address 0x4 - core index']
  #allocation1 [shape = 'u32[144,128]{1,0:T(1,128)}', space=vmem, size = 0x12000, scoped, tag = 'internal scratch']
  %s0 = inlined_call_operand.hbm [shape: bf16[8,64], index: 0, kind: input, shape index: {}]
  %s1 = inlined_call_operand.hbm [shape: bf16[64,512], index: 1, kind: input, shape index: {}]
  %s2 = inlined_call_operand.vmem [shape: f32[1,512], index: 2, kind: input, shape index: {}]
  %s3 = inlined_call_operand.hbm [shape: bf16[512,512], index: 3, kind: input, shape index: {}]
  %s4 = inlined_call_operand.vmem [shape: f32[1,512], index: 4, kind: input, shape index: {}]
  %s5 = inlined_call_operand.hbm [shape: bf16[512,512], index: 5, kind: input, shape index: {}]
  %s6 = inlined_call_operand.vmem [shape: f32[1,512], index: 6, kind: input, shape index: {}]
  %s7 = inlined_call_operand.hbm [shape: bf16[512,128], index: 7, kind: input, shape index: {}]
  %s8 = inlined_call_operand.vmem [shape: f32[1,128], index: 8, kind: input, shape index: {}]
  %s9 = inlined_call_operand.hbm [shape: f32[8,128], index: 9, kind: output, shape index: {}]
  %s10 = sld [smem:[#allocation0]]
  $region66: #{tpu_custom_call.1} parent=0
    _
  %s12 = ssub.s32 1, %s10
  %s13 = scalar_select 0, %s12, %s10
  $region1: #{tpu_custom_call.1} parent=0
    #allocation2 [shape = 'u8[2048]{0}', space=vmem, size = 0x800, scoped, tag = 'input window, operand 0, single buffered']
    #allocation3 [shape = 's32[1]{0}', space=sflag, size = 0x4, scoped, tag = 'scoped memory for tpu_custom_call.1']
    #allocation4 [shape = 's32[1]{0}', space=sflag, size = 0x4, scoped, tag = 'scoped memory for tpu_custom_call.1']
    #allocation5 [shape = 'u8[65536]{0}', space=vmem, size = 0x10000, scoped, tag = 'input window, operand 1, single buffered']
    #allocation6 [shape = 's32[1]{0}', space=sflag, size = 0x4, scoped, tag = 'scoped memory for tpu_custom_call.1']
    #allocation7 [shape = 'u8[524288]{0}', space=vmem, size = 0x80000, scoped, tag = 'input window, operand 3, single buffered']
    #allocation8 [shape = 'u8[524288]{0}', space=vmem, size = 0x80000, scoped, tag = 'input window, operand 5, single buffered']
    #allocation9 [shape = 's32[1]{0}', space=sflag, size = 0x4, scoped, tag = 'scoped memory for tpu_custom_call.1']
    #allocation10 [shape = 'u8[131072]{0}', space=vmem, size = 0x20000, scoped, tag = 'input window, operand 7, single buffered']
    #allocation11 [shape = 'u8[4096]{0}', space=vmem, size = 0x1000, scoped, tag = 'output window, operand 0, single buffered']
    %14 = vsyncpa [#allocation3], 0
    %15 = vsyncpa [#allocation6], 0
    %16 = vsyncpa [#allocation9], 0
    %17 = vsyncpa [#allocation4], 0
    // Predicated region
    $region2: #{tpu_custom_call.1} parent=1 // pred_check
      _
    $region3: #{tpu_custom_call.1} parent=1 // pred_check_branch
      %19 = sbr.rel (0) target = $region5
    $region4: #{tpu_custom_call.1} parent=1 // pred_region
      %s21 = ssub.s32 64, 64
      %22 = vsyncadd [#allocation3], %s21
      %s24 = sshll.u32 [#allocation2], 4
      %s25 = int_to_ptr.vmem [resolvable:$true] %s24
      %27 = dma.hbm_to_vmem [thread:$0]  %s0, 64, %s25, [#allocation3]
    $region5: #{tpu_custom_call.1} parent=1 // pred_fallthru
      _
    // Predicated region
    $region6: #{tpu_custom_call.1} parent=1 // pred_check
      _
    $region7: #{tpu_custom_call.1} parent=1 // pred_check_branch
      %29 = sbr.rel (0) target = $region9
    $region8: #{tpu_custom_call.1} parent=1 // pred_region
      %s31 = ssub.s32 2048, 2048
      %32 = vsyncadd [#allocation6], %s31
      %s33 = sshll.u32 [#allocation5], 4
      %s34 = int_to_ptr.vmem [resolvable:$true] %s33
      %39 = dma.hbm_to_vmem [thread:$0]  %s1, 2048, %s34, [#allocation6], 256, 256, 16
    $region9: #{tpu_custom_call.1} parent=1 // pred_fallthru
      _
    // Predicated region
    $region10: #{tpu_custom_call.1} parent=1 // pred_check
      _
    $region11: #{tpu_custom_call.1} parent=1 // pred_check_branch
      %41 = sbr.rel (0) target = $region13
    $region12: #{tpu_custom_call.1} parent=1 // pred_region
      _
    $region13: #{tpu_custom_call.1} parent=1 // pred_fallthru
      _
    // Predicated region
    $region14: #{tpu_custom_call.1} parent=1 // pred_check
      _
    $region15: #{tpu_custom_call.1} parent=1 // pred_check_branch
      %43 = sbr.rel (0) target = $region17
    $region16: #{tpu_custom_call.1} parent=1 // pred_region
      %s45 = ssub.s32 16384, 16384
      %46 = vsyncadd [#allocation6], %s45
      %s47 = sshll.u32 [#allocation7], 4
      %s48 = int_to_ptr.vmem [resolvable:$true] %s47
      %53 = dma.hbm_to_vmem [thread:$0]  %s3, 16384, %s48, [#allocation6], 256, 256, 16
    $region17: #{tpu_custom_call.1} parent=1 // pred_fallthru
      _
    // Predicated region
    $region18: #{tpu_custom_call.1} parent=1 // pred_check
      _
    $region19: #{tpu_custom_call.1} parent=1 // pred_check_branch
      %55 = sbr.rel (0) target = $region21
    $region20: #{tpu_custom_call.1} parent=1 // pred_region
      _
    $region21: #{tpu_custom_call.1} parent=1 // pred_fallthru
      _
    // Predicated region
    $region22: #{tpu_custom_call.1} parent=1 // pred_check
      _
    $region23: #{tpu_custom_call.1} parent=1 // pred_check_branch
      %57 = sbr.rel (0) target = $region25
    $region24: #{tpu_custom_call.1} parent=1 // pred_region
      %s59 = ssub.s32 16384, 16384
      %60 = vsyncadd [#allocation9], %s59
      %s61 = sshll.u32 [#allocation8], 4
      %s62 = int_to_ptr.vmem [resolvable:$true] %s61
      %67 = dma.hbm_to_vmem [thread:$0]  %s5, 16384, %s62, [#allocation9], 256, 256, 16
    $region25: #{tpu_custom_call.1} parent=1 // pred_fallthru
      _
    // Predicated region
    $region26: #{tpu_custom_call.1} parent=1 // pred_check
      _
    $region27: #{tpu_custom_call.1} parent=1 // pred_check_branch
      %69 = sbr.rel (0) target = $region29
    $region28: #{tpu_custom_call.1} parent=1 // pred_region
      _
    $region29: #{tpu_custom_call.1} parent=1 // pred_fallthru
      _
    // Predicated region
    $region30: #{tpu_custom_call.1} parent=1 // pred_check
      _
    $region31: #{tpu_custom_call.1} parent=1 // pred_check_branch
      %71 = sbr.rel (0) target = $region33
    $region32: #{tpu_custom_call.1} parent=1 // pred_region
      %s73 = ssub.s32 4096, 4096
      %74 = vsyncadd [#allocation9], %s73
      %s75 = sshll.u32 [#allocation10], 4
      %s76 = int_to_ptr.vmem [resolvable:$true] %s75
      %81 = dma.hbm_to_vmem [thread:$0]  %s7, 4096, %s76, [#allocation9], 64, 64, 4
    $region33: #{tpu_custom_call.1} parent=1 // pred_fallthru
      _
    // Predicated region
    $region34: #{tpu_custom_call.1} parent=1 // pred_check
      _
    $region35: #{tpu_custom_call.1} parent=1 // pred_check_branch
      %83 = sbr.rel (0) target = $region37
    $region36: #{tpu_custom_call.1} parent=1 // pred_region
      _
    $region37: #{tpu_custom_call.1} parent=1 // pred_fallthru
      _
    // Predicated region
    $region38: #{tpu_custom_call.1} parent=1 // pred_check
      _
    $region39: #{tpu_custom_call.1} parent=1 // pred_check_branch
      %85 = sbr.rel (0) target = $region41
    $region40: #{tpu_custom_call.1} parent=1 // pred_region
      %86 = dma.done [#allocation3], 64
    $region41: #{tpu_custom_call.1} parent=1 // pred_fallthru
      _
    // Predicated region
    $region42: #{tpu_custom_call.1} parent=1 // pred_check
      _
    $region43: #{tpu_custom_call.1} parent=1 // pred_check_branch
      %88 = sbr.rel (0) target = $region45
    $region44: #{tpu_custom_call.1} parent=1 // pred_region
      %89 = dma.done [#allocation6], 2048
    $region45: #{tpu_custom_call.1} parent=1 // pred_fallthru
      _
    // Predicated region
    $region46: #{tpu_custom_call.1} parent=1 // pred_check
      _
    $region47: #{tpu_custom_call.1} parent=1 // pred_check_branch
      %91 = sbr.rel (0) target = $region49
    $region48: #{tpu_custom_call.1} parent=1 // pred_region
      %92 = dma.done [#allocation6], 16384
    $region49: #{tpu_custom_call.1} parent=1 // pred_fallthru
      _
    // Predicated region
    $region50: #{tpu_custom_call.1} parent=1 // pred_check
      _
    $region51: #{tpu_custom_call.1} parent=1 // pred_check_branch
      %94 = sbr.rel (0) target = $region53
    $region52: #{tpu_custom_call.1} parent=1 // pred_region
      %95 = dma.done [#allocation9], 16384
    $region53: #{tpu_custom_call.1} parent=1 // pred_fallthru
      _
    // Predicated region
    $region54: #{tpu_custom_call.1} parent=1 // pred_check
      _
    $region55: #{tpu_custom_call.1} parent=1 // pred_check_branch
      %97 = sbr.rel (0) target = $region57
    $region56: #{tpu_custom_call.1} parent=1 // pred_region
      %98 = dma.done [#allocation9], 4096
    $region57: #{tpu_custom_call.1} parent=1 // pred_fallthru
      _
    %v100 = vld [vmem:[#allocation2] sm:$0xf]
    %v101 = vld [vmem:[#allocation5] sm:$0xff]
    %v102 = vld [vmem:[#allocation5 + $0x8] sm:$0xff]
    %v103 = vld [vmem:[#allocation5 + $0x10] sm:$0xff]
    %v104 = vld [vmem:[#allocation5 + $0x18] sm:$0xff]
    %v105 = vld [vmem:[#allocation5 + $0x20] sm:$0xff]
    %v106 = vld [vmem:[#allocation5 + $0x28] sm:$0xff]
    %v107 = vld [vmem:[#allocation5 + $0x30] sm:$0xff]
    %v108 = vld [vmem:[#allocation5 + $0x38] sm:$0xff]
    %v109 = vld [vmem:[#allocation5 + $0x40] sm:$0xff]
    %v110 = vld [vmem:[#allocation5 + $0x48] sm:$0xff]
    %v111 = vld [vmem:[#allocation5 + $0x50] sm:$0xff]
    %v112 = vld [vmem:[#allocation5 + $0x58] sm:$0xff]
    %v113 = vld [vmem:[#allocation5 + $0x60] sm:$0xff]
    %v114 = vld [vmem:[#allocation5 + $0x68] sm:$0xff]
    %v115 = vld [vmem:[#allocation5 + $0x70] sm:$0xff]
    %v116 = vld [vmem:[#allocation5 + $0x78] sm:$0xff]
    %v117 = vld [vmem:[%s2] sm:$0xf]
    %v119 = vlaneseq
    %v120 = vshrl.u32 %v119, 7
    %v121 = vsub.s32 0, %v120
    %v122 = vrot.slane %v117, %v121
    %v123 = vlaneseq
    %v124 = vshrl.u32 %v123, 7
    %v125 = vsub.s32 1, %v124
    %v126 = vrot.slane %v117, %v125
    %v127 = vlaneseq
    %v128 = vshrl.u32 %v127, 7
    %v129 = vsub.s32 2, %v128
    %v130 = vrot.slane %v117, %v129
    %v131 = vlaneseq
    %v132 = vshrl.u32 %v131, 7
    %v133 = vsub.s32 3, %v132
    %v134 = vrot.slane %v117, %v133
    %v155 = vunpack.c.l.b16 %v101
    %v156 = vunpack.c.h.b16 %v101
    %v157 = vunpack.c.l.b16 %v102
    %v158 = vunpack.c.h.b16 %v102
    %v159 = vunpack.c.l.b16 %v103
    %v160 = vunpack.c.h.b16 %v103
    %v161 = vunpack.c.l.b16 %v104
    %v162 = vunpack.c.h.b16 %v104
    %v163 = vunpack.c.l.b16 %v105
    %v164 = vunpack.c.h.b16 %v105
    %v165 = vunpack.c.l.b16 %v106
    %v166 = vunpack.c.h.b16 %v106
    %v167 = vunpack.c.l.b16 %v107
    %v168 = vunpack.c.h.b16 %v107
    %v169 = vunpack.c.l.b16 %v108
    %v170 = vunpack.c.h.b16 %v108
    %v171 = vunpack.c.l.b16 %v109
    %v172 = vunpack.c.h.b16 %v109
    %v173 = vunpack.c.l.b16 %v110
    %v174 = vunpack.c.h.b16 %v110
    %v175 = vunpack.c.l.b16 %v111
    %v176 = vunpack.c.h.b16 %v111
    %v177 = vunpack.c.l.b16 %v112
    %v178 = vunpack.c.h.b16 %v112
    %v179 = vunpack.c.l.b16 %v113
    %v180 = vunpack.c.h.b16 %v113
    %v181 = vunpack.c.l.b16 %v114
    %v182 = vunpack.c.h.b16 %v114
    %v183 = vunpack.c.l.b16 %v115
    %v184 = vunpack.c.h.b16 %v115
    %v185 = vunpack.c.l.b16 %v116
    %v186 = vunpack.c.h.b16 %v116
    %v187 = vpack.c.b16 %v159, %v155
    %v188 = vpack.c.b16 %v160, %v156
    %v189 = vpack.c.b16 %v161, %v157
    %v190 = vpack.c.b16 %v162, %v158
    %v191 = vpack.c.b16 %v167, %v163
    %v192 = vpack.c.b16 %v168, %v164
    %v193 = vpack.c.b16 %v169, %v165
    %v194 = vpack.c.b16 %v170, %v166
    %v195 = vpack.c.b16 %v175, %v171
    %v196 = vpack.c.b16 %v176, %v172
    %v197 = vpack.c.b16 %v177, %v173
    %v198 = vpack.c.b16 %v178, %v174
    %v199 = vpack.c.b16 %v183, %v179
    %v200 = vpack.c.b16 %v184, %v180
    %v201 = vpack.c.b16 %v185, %v181
    %v202 = vpack.c.b16 %v186, %v182
    %vm219 = vcmask 523264
    %v221 = vsel %vm219, %v100, 0
    %223 = vmatprep.subr.bf16.mxu0 %v188
    %224 = vmatpush1.bf16.msra.mxu0 %v187
    %225 = vmatprep.subr.bf16.mxu0 %v192
    %226 = vmatpush1.bf16.msra.mxu0 %v191
    %227 = vmatprep.subr.bf16.mxu0 %v196
    %228 = vmatpush1.bf16.msra.mxu0 %v195
    %229 = vmatprep.subr.bf16.mxu0 %v200
    %230 = vmatpush1.bf16.msra.mxu0 %v199
    %231 = vmatprep.subr.bf16.mxu0 0
    %232 = vmatpush1.bf16.msra.mxu0 0
    %233 = vmatprep.subr.bf16.mxu0 0
    %234 = vmatpush1.bf16.msra.mxu0 0
    %235 = vmatprep.subr.bf16.mxu0 0
    %236 = vmatpush1.bf16.msra.mxu0 0
    %237 = vmatprep.subr.bf16.mxu0 0
    %238 = vmatpush1.bf16.msra.mxu0 0
    %239 = vmatprep.subr.bf16.mxu0 0
    %240 = vmatpush1.bf16.msra.mxu0 0
    %241 = vmatprep.subr.bf16.mxu0 0
    %242 = vmatpush1.bf16.msra.mxu0 0
    %243 = vmatprep.subr.bf16.mxu0 0
    %244 = vmatpush1.bf16.msra.mxu0 0
    %245 = vmatprep.subr.bf16.mxu0 0
    %246 = vmatpush1.bf16.msra.mxu0 0
    %247 = vmatprep.subr.bf16.mxu0 0
    %248 = vmatpush1.bf16.msra.mxu0 0
    %249 = vmatprep.subr.bf16.mxu0 0
    %250 = vmatpush1.bf16.msra.mxu0 0
    %251 = vmatprep.subr.bf16.mxu0 0
    %252 = vmatpush1.bf16.msra.mxu0 0
    %253 = vmatprep.subr.bf16.mxu0 0
    %254 = vmatpush1.bf16.msra.mxu0 0
    %255 = vmatprep.mubr.bf16.mxu0 0
    %256 = vmatmul.mubr.bf16.gmra.mrb[0].mxu0 %v221
    %v257 = vpop.f32.mrb[0].mxu0
    %v258 = vadd.f32 %v122, %v257
    %v259 = vpop.f32.mrb[0].mxu0
    %v260 = vadd.f32 %v126, %v259
    %v261 = vpop.f32.mrb[0].mxu0
    %v262 = vpop.f32.mrb[0].mxu0
    %263 = vdwg.mxu0
    %264 = vmatprep.subr.bf16.mxu0 %v190
    %265 = vmatpush1.bf16.msra.mxu0 %v189
    %266 = vmatprep.subr.bf16.mxu0 %v194
    %267 = vmatpush1.bf16.msra.mxu0 %v193
    %268 = vmatprep.subr.bf16.mxu0 %v198
    %269 = vmatpush1.bf16.msra.mxu0 %v197
    %270 = vmatprep.subr.bf16.mxu0 %v202
    %271 = vmatpush1.bf16.msra.mxu0 %v201
    %272 = vmatprep.subr.bf16.mxu0 0
    %273 = vmatpush1.bf16.msra.mxu0 0
    %274 = vmatprep.subr.bf16.mxu0 0
    %275 = vmatpush1.bf16.msra.mxu0 0
    %276 = vmatprep.subr.bf16.mxu0 0
    %277 = vmatpush1.bf16.msra.mxu0 0
    %278 = vmatprep.subr.bf16.mxu0 0
    %279 = vmatpush1.bf16.msra.mxu0 0
    %280 = vmatprep.subr.bf16.mxu0 0
    %281 = vmatpush1.bf16.msra.mxu0 0
    %282 = vmatprep.subr.bf16.mxu0 0
    %283 = vmatpush1.bf16.msra.mxu0 0
    %284 = vmatprep.subr.bf16.mxu0 0
    %285 = vmatpush1.bf16.msra.mxu0 0
    %286 = vmatprep.subr.bf16.mxu0 0
    %287 = vmatpush1.bf16.msra.mxu0 0
    %288 = vmatprep.subr.bf16.mxu0 0
    %289 = vmatpush1.bf16.msra.mxu0 0
    %290 = vmatprep.subr.bf16.mxu0 0
    %291 = vmatpush1.bf16.msra.mxu0 0
    %292 = vmatprep.subr.bf16.mxu0 0
    %293 = vmatpush1.bf16.msra.mxu0 0
    %294 = vmatprep.subr.bf16.mxu0 0
    %295 = vmatpush1.bf16.msra.mxu0 0
    %296 = vmatprep.mubr.bf16.mxu0 0
    %297 = vmatmul.mubr.bf16.gmra.mrb[0].mxu0 %v221
    %v298 = vpop.f32.mrb[0].mxu0
    %v299 = vadd.f32 %v130, %v298
    %v300 = vpop.f32.mrb[0].mxu0
    %v301 = vadd.f32 %v134, %v300
    %v302 = vpop.f32.mrb[0].mxu0
    %v303 = vpop.f32.mrb[0].mxu0
    %304 = vdwg.mxu0
    %v305 = vmax.f32 %v258, 0.0
    %v306 = vmax.f32 %v260, 0.0
    %v307 = vmax.f32 %v299, 0.0
    %v308 = vmax.f32 %v301, 0.0
    %v309 = vpack.c.bf16 %v305, %v305
    %v310 = vpack.c.bf16 %v306, %v306
    %v311 = vpack.c.bf16 %v307, %v307
    %v312 = vpack.c.bf16 %v308, %v308
    %v313 = vld [vmem:[#allocation7] sm:$0xff]
    %v314 = vld [vmem:[#allocation7 + $0x8] sm:$0xff]
    %v315 = vld [vmem:[#allocation7 + $0x10] sm:$0xff]
    %v316 = vld [vmem:[#allocation7 + $0x18] sm:$0xff]
    %v317 = vld [vmem:[#allocation7 + $0x20] sm:$0xff]
    %v318 = vld [vmem:[#allocation7 + $0x28] sm:$0xff]
    %v319 = vld [vmem:[#allocation7 + $0x30] sm:$0xff]
    %v320 = vld [vmem:[#allocation7 + $0x38] sm:$0xff]
    %v321 = vld [vmem:[#allocation7 + $0x40] sm:$0xff]
    %v322 = vld [vmem:[#allocation7 + $0x48] sm:$0xff]
    %v323 = vld [vmem:[#allocation7 + $0x50] sm:$0xff]
    %v324 = vld [vmem:[#allocation7 + $0x58] sm:$0xff]
    %v325 = vld [vmem:[#allocation7 + $0x60] sm:$0xff]
    %v326 = vld [vmem:[#allocation7 + $0x68] sm:$0xff]
    %v327 = vld [vmem:[#allocation7 + $0x70] sm:$0xff]
    %v328 = vld [vmem:[#allocation7 + $0x78] sm:$0xff]
    %v329 = vld [vmem:[#allocation7 + $0x80] sm:$0xff]
    %v330 = vld [vmem:[#allocation7 + $0x88] sm:$0xff]
    %v331 = vld [vmem:[#allocation7 + $0x90] sm:$0xff]
    %v332 = vld [vmem:[#allocation7 + $0x98] sm:$0xff]
    %v333 = vld [vmem:[#allocation7 + $0xa0] sm:$0xff]
    %v334 = vld [vmem:[#allocation7 + $0xa8] sm:$0xff]
    %v335 = vld [vmem:[#allocation7 + $0xb0] sm:$0xff]
    %v336 = vld [vmem:[#allocation7 + $0xb8] sm:$0xff]
    %v337 = vld [vmem:[#allocation7 + $0xc0] sm:$0xff]
    %v338 = vld [vmem:[#allocation7 + $0xc8] sm:$0xff]
    %v339 = vld [vmem:[#allocation7 + $0xd0] sm:$0xff]
    %v340 = vld [vmem:[#allocation7 + $0xd8] sm:$0xff]
    %v341 = vld [vmem:[#allocation7 + $0xe0] sm:$0xff]
    %v342 = vld [vmem:[#allocation7 + $0xe8] sm:$0xff]
    %v343 = vld [vmem:[#allocation7 + $0xf0] sm:$0xff]
    %v344 = vld [vmem:[#allocation7 + $0xf8] sm:$0xff]
    %v345 = vld [vmem:[#allocation7 + $0x100] sm:$0xff]
    %v346 = vld [vmem:[#allocation7 + $0x108] sm:$0xff]
    %v347 = vld [vmem:[#allocation7 + $0x110] sm:$0xff]
    %v348 = vld [vmem:[#allocation7 + $0x118] sm:$0xff]
    %v349 = vld [vmem:[#allocation7 + $0x120] sm:$0xff]
    %v350 = vld [vmem:[#allocation7 + $0x128] sm:$0xff]
    %v351 = vld [vmem:[#allocation7 + $0x130] sm:$0xff]
    %v352 = vld [vmem:[#allocation7 + $0x138] sm:$0xff]
    %v353 = vld [vmem:[#allocation7 + $0x140] sm:$0xff]
    %v354 = vld [vmem:[#allocation7 + $0x148] sm:$0xff]
    %v355 = vld [vmem:[#allocation7 + $0x150] sm:$0xff]
    %v356 = vld [vmem:[#allocation7 + $0x158] sm:$0xff]
    %v357 = vld [vmem:[#allocation7 + $0x160] sm:$0xff]
    %v358 = vld [vmem:[#allocation7 + $0x168] sm:$0xff]
    %v359 = vld [vmem:[#allocation7 + $0x170] sm:$0xff]
    %v360 = vld [vmem:[#allocation7 + $0x178] sm:$0xff]
    %v361 = vld [vmem:[#allocation7 + $0x180] sm:$0xff]
    %v362 = vld [vmem:[#allocation7 + $0x188] sm:$0xff]
    %v363 = vld [vmem:[#allocation7 + $0x190] sm:$0xff]
    %v364 = vld [vmem:[#allocation7 + $0x198] sm:$0xff]
    %v365 = vld [vmem:[#allocation7 + $0x1a0] sm:$0xff]
    %v366 = vld [vmem:[#allocation7 + $0x1a8] sm:$0xff]
    %v367 = vld [vmem:[#allocation7 + $0x1b0] sm:$0xff]
    %v368 = vld [vmem:[#allocation7 + $0x1b8] sm:$0xff]
    %v369 = vld [vmem:[#allocation7 + $0x1c0] sm:$0xff]
    %v370 = vld [vmem:[#allocation7 + $0x1c8] sm:$0xff]
    %v371 = vld [vmem:[#allocation7 + $0x1d0] sm:$0xff]
    %v372 = vld [vmem:[#allocation7 + $0x1d8] sm:$0xff]
    %v373 = vld [vmem:[#allocation7 + $0x1e0] sm:$0xff]
    %v374 = vld [vmem:[#allocation7 + $0x1e8] sm:$0xff]
    %v375 = vld [vmem:[#allocation7 + $0x1f0] sm:$0xff]
    %v376 = vld [vmem:[#allocation7 + $0x1f8] sm:$0xff]
    %v377 = vld [vmem:[#allocation7 + $0x200] sm:$0xff]
    %v378 = vld [vmem:[#allocation7 + $0x208] sm:$0xff]
    %v379 = vld [vmem:[#allocation7 + $0x210] sm:$0xff]
    %v380 = vld [vmem:[#allocation7 + $0x218] sm:$0xff]
    %v381 = vld [vmem:[#allocation7 + $0x220] sm:$0xff]
    %v382 = vld [vmem:[#allocation7 + $0x228] sm:$0xff]
    %v383 = vld [vmem:[#allocation7 + $0x230] sm:$0xff]
    %v384 = vld [vmem:[#allocation7 + $0x238] sm:$0xff]
    %v385 = vld [vmem:[#allocation7 + $0x240] sm:$0xff]
    %v386 = vld [vmem:[#allocation7 + $0x248] sm:$0xff]
    %v387 = vld [vmem:[#allocation7 + $0x250] sm:$0xff]
    %v388 = vld [vmem:[#allocation7 + $0x258] sm:$0xff]
    %v389 = vld [vmem:[#allocation7 + $0x260] sm:$0xff]
    %v390 = vld [vmem:[#allocation7 + $0x268] sm:$0xff]
    %v391 = vld [vmem:[#allocation7 + $0x270] sm:$0xff]
    %v392 = vld [vmem:[#allocation7 + $0x278] sm:$0xff]
    %v393 = vld [vmem:[#allocation7 + $0x280] sm:$0xff]
    %v394 = vld [vmem:[#allocation7 + $0x288] sm:$0xff]
    %v395 = vld [vmem:[#allocation7 + $0x290] sm:$0xff]
    %v396 = vld [vmem:[#allocation7 + $0x298] sm:$0xff]
    %v397 = vld [vmem:[#allocation7 + $0x2a0] sm:$0xff]
    %v398 = vld [vmem:[#allocation7 + $0x2a8] sm:$0xff]
    %v399 = vld [vmem:[#allocation7 + $0x2b0] sm:$0xff]
    %v400 = vld [vmem:[#allocation7 + $0x2b8] sm:$0xff]
    %v401 = vld [vmem:[#allocation7 + $0x2c0] sm:$0xff]
    %v402 = vld [vmem:[#allocation7 + $0x2c8] sm:$0xff]
    %v403 = vld [vmem:[#allocation7 + $0x2d0] sm:$0xff]
    %v404 = vld [vmem:[#allocation7 + $0x2d8] sm:$0xff]
    %v405 = vld [vmem:[#allocation7 + $0x2e0] sm:$0xff]
    %v406 = vld [vmem:[#allocation7 + $0x2e8] sm:$0xff]
    %v407 = vld [vmem:[#allocation7 + $0x2f0] sm:$0xff]
    %v408 = vld [vmem:[#allocation7 + $0x2f8] sm:$0xff]
    %v409 = vld [vmem:[#allocation7 + $0x300] sm:$0xff]
    %v410 = vld [vmem:[#allocation7 + $0x308] sm:$0xff]
    %v411 = vld [vmem:[#allocation7 + $0x310] sm:$0xff]
    %v412 = vld [vmem:[#allocation7 + $0x318] sm:$0xff]
    %v413 = vld [vmem:[#allocation7 + $0x320] sm:$0xff]
    %v414 = vld [vmem:[#allocation7 + $0x328] sm:$0xff]
    %v415 = vld [vmem:[#allocation7 + $0x330] sm:$0xff]
    %v416 = vld [vmem:[#allocation7 + $0x338] sm:$0xff]
    %v417 = vld [vmem:[#allocation7 + $0x340] sm:$0xff]
    %v418 = vld [vmem:[#allocation7 + $0x348] sm:$0xff]
    %v419 = vld [vmem:[#allocation7 + $0x350] sm:$0xff]
    %v420 = vld [vmem:[#allocation7 + $0x358] sm:$0xff]
    %v421 = vld [vmem:[#allocation7 + $0x360] sm:$0xff]
    %v422 = vld [vmem:[#allocation7 + $0x368] sm:$0xff]
    %v423 = vld [vmem:[#allocation7 + $0x370] sm:$0xff]
    %v424 = vld [vmem:[#allocation7 + $0x378] sm:$0xff]
    %v425 = vld [vmem:[#allocation7 + $0x380] sm:$0xff]
    %v426 = vld [vmem:[#allocation7 + $0x388] sm:$0xff]
    %v427 = vld [vmem:[#allocation7 + $0x390] sm:$0xff]
    %v428 = vld [vmem:[#allocation7 + $0x398] sm:$0xff]
    %v429 = vld [vmem:[#allocation7 + $0x3a0] sm:$0xff]
    %v430 = vld [vmem:[#allocation7 + $0x3a8] sm:$0xff]
    %v431 = vld [vmem:[#allocation7 + $0x3b0] sm:$0xff]
    %v432 = vld [vmem:[#allocation7 + $0x3b8] sm:$0xff]
    %v433 = vld [vmem:[#allocation7 + $0x3c0] sm:$0xff]
    %v434 = vld [vmem:[#allocation7 + $0x3c8] sm:$0xff]
    %v435 = vld [vmem:[#allocation7 + $0x3d0] sm:$0xff]
    %v436 = vld [vmem:[#allocation7 + $0x3d8] sm:$0xff]
    %v437 = vld [vmem:[#allocation7 + $0x3e0] sm:$0xff]
    %v438 = vld [vmem:[#allocation7 + $0x3e8] sm:$0xff]
    %v439 = vld [vmem:[#allocation7 + $0x3f0] sm:$0xff]
    %v440 = vld [vmem:[#allocation7 + $0x3f8] sm:$0xff]
    %v441 = vld [vmem:[%s4] sm:$0xf]
    %v443 = vlaneseq
    %v444 = vshrl.u32 %v443, 7
    %v445 = vsub.s32 0, %v444
    %v446 = vrot.slane %v441, %v445
    %v447 = vlaneseq
    %v448 = vshrl.u32 %v447, 7
    %v449 = vsub.s32 1, %v448
    %v450 = vrot.slane %v441, %v449
    %v451 = vlaneseq
    %v452 = vshrl.u32 %v451, 7
    %v453 = vsub.s32 2, %v452
    %v454 = vrot.slane %v441, %v453
    %v455 = vlaneseq
    %v456 = vshrl.u32 %v455, 7
    %v457 = vsub.s32 3, %v456
    %v458 = vrot.slane %v441, %v457
    %v591 = vunpack.c.l.b16 %v313
    %v592 = vunpack.c.h.b16 %v313
    %v593 = vunpack.c.l.b16 %v314
    %v594 = vunpack.c.h.b16 %v314
    %v595 = vunpack.c.l.b16 %v315
    %v596 = vunpack.c.h.b16 %v315
    %v597 = vunpack.c.l.b16 %v316
    %v598 = vunpack.c.h.b16 %v316
    %v599 = vunpack.c.l.b16 %v317
    %v600 = vunpack.c.h.b16 %v317
    %v601 = vunpack.c.l.b16 %v318
    %v602 = vunpack.c.h.b16 %v318
    %v603 = vunpack.c.l.b16 %v319
    %v604 = vunpack.c.h.b16 %v319
    %v605 = vunpack.c.l.b16 %v320
    %v606 = vunpack.c.h.b16 %v320
    %v607 = vunpack.c.l.b16 %v321
    %v608 = vunpack.c.h.b16 %v321
    %v609 = vunpack.c.l.b16 %v322
    %v610 = vunpack.c.h.b16 %v322
    %v611 = vunpack.c.l.b16 %v323
    %v612 = vunpack.c.h.b16 %v323
    %v613 = vunpack.c.l.b16 %v324
    %v614 = vunpack.c.h.b16 %v324
    %v615 = vunpack.c.l.b16 %v325
    %v616 = vunpack.c.h.b16 %v325
    %v617 = vunpack.c.l.b16 %v326
    %v618 = vunpack.c.h.b16 %v326
    %v619 = vunpack.c.l.b16 %v327
    %v620 = vunpack.c.h.b16 %v327
    %v621 = vunpack.c.l.b16 %v328
    %v622 = vunpack.c.h.b16 %v328
    %v623 = vunpack.c.l.b16 %v329
    %v624 = vunpack.c.h.b16 %v329
    %v625 = vunpack.c.l.b16 %v330
    %v626 = vunpack.c.h.b16 %v330
    %v627 = vunpack.c.l.b16 %v331
    %v628 = vunpack.c.h.b16 %v331
    %v629 = vunpack.c.l.b16 %v332
    %v630 = vunpack.c.h.b16 %v332
    %v631 = vunpack.c.l.b16 %v333
    %v632 = vunpack.c.h.b16 %v333
    %v633 = vunpack.c.l.b16 %v334
    %v634 = vunpack.c.h.b16 %v334
    %v635 = vunpack.c.l.b16 %v335
    %v636 = vunpack.c.h.b16 %v335
    %v637 = vunpack.c.l.b16 %v336
    %v638 = vunpack.c.h.b16 %v336
    %v639 = vunpack.c.l.b16 %v337
    %v640 = vunpack.c.h.b16 %v337
    %v641 = vunpack.c.l.b16 %v338
    %v642 = vunpack.c.h.b16 %v338
    %v643 = vunpack.c.l.b16 %v339
    %v644 = vunpack.c.h.b16 %v339
    %v645 = vunpack.c.l.b16 %v340
    %v646 = vunpack.c.h.b16 %v340
    %v647 = vunpack.c.l.b16 %v341
    %v648 = vunpack.c.h.b16 %v341
    %v649 = vunpack.c.l.b16 %v342
    %v650 = vunpack.c.h.b16 %v342
    %v651 = vunpack.c.l.b16 %v343
    %v652 = vunpack.c.h.b16 %v343
    %v653 = vunpack.c.l.b16 %v344
    %v654 = vunpack.c.h.b16 %v344
    %v655 = vunpack.c.l.b16 %v345
    %v656 = vunpack.c.h.b16 %v345
    %v657 = vunpack.c.l.b16 %v346
    %v658 = vunpack.c.h.b16 %v346
    %v659 = vunpack.c.l.b16 %v347
    %v660 = vunpack.c.h.b16 %v347
    %v661 = vunpack.c.l.b16 %v348
    %v662 = vunpack.c.h.b16 %v348
    %v663 = vunpack.c.l.b16 %v349
    %v664 = vunpack.c.h.b16 %v349
    %v665 = vunpack.c.l.b16 %v350
    %v666 = vunpack.c.h.b16 %v350
    %v667 = vunpack.c.l.b16 %v351
    %v668 = vunpack.c.h.b16 %v351
    %v669 = vunpack.c.l.b16 %v352
    %v670 = vunpack.c.h.b16 %v352
    %v671 = vunpack.c.l.b16 %v353
    %v672 = vunpack.c.h.b16 %v353
    %v673 = vunpack.c.l.b16 %v354
    %v674 = vunpack.c.h.b16 %v354
    %v675 = vunpack.c.l.b16 %v355
    %v676 = vunpack.c.h.b16 %v355
    %v677 = vunpack.c.l.b16 %v356
    %v678 = vunpack.c.h.b16 %v356
    %v679 = vunpack.c.l.b16 %v357
    %v680 = vunpack.c.h.b16 %v357
    %v681 = vunpack.c.l.b16 %v358
    %v682 = vunpack.c.h.b16 %v358
    %v683 = vunpack.c.l.b16 %v359
    %v684 = vunpack.c.h.b16 %v359
    %v685 = vunpack.c.l.b16 %v360
    %v686 = vunpack.c.h.b16 %v360
    %v687 = vunpack.c.l.b16 %v361
    %v688 = vunpack.c.h.b16 %v361
    %v689 = vunpack.c.l.b16 %v362
    %v690 = vunpack.c.h.b16 %v362
    %v691 = vunpack.c.l.b16 %v363
    %v692 = vunpack.c.h.b16 %v363
    %v693 = vunpack.c.l.b16 %v364
    %v694 = vunpack.c.h.b16 %v364
    %v695 = vunpack.c.l.b16 %v365
    %v696 = vunpack.c.h.b16 %v365
    %v697 = vunpack.c.l.b16 %v366
    %v698 = vunpack.c.h.b16 %v366
    %v699 = vunpack.c.l.b16 %v367
    %v700 = vunpack.c.h.b16 %v367
    %v701 = vunpack.c.l.b16 %v368
    %v702 = vunpack.c.h.b16 %v368
    %v703 = vunpack.c.l.b16 %v369
    %v704 = vunpack.c.h.b16 %v369
    %v705 = vunpack.c.l.b16 %v370
    %v706 = vunpack.c.h.b16 %v370
    %v707 = vunpack.c.l.b16 %v371
    %v708 = vunpack.c.h.b16 %v371
    %v709 = vunpack.c.l.b16 %v372
    %v710 = vunpack.c.h.b16 %v372
    %v711 = vunpack.c.l.b16 %v373
    %v712 = vunpack.c.h.b16 %v373
    %v713 = vunpack.c.l.b16 %v374
    %v714 = vunpack.c.h.b16 %v374
    %v715 = vunpack.c.l.b16 %v375
    %v716 = vunpack.c.h.b16 %v375
    %v717 = vunpack.c.l.b16 %v376
    %v718 = vunpack.c.h.b16 %v376
    %v719 = vunpack.c.l.b16 %v377
    %v720 = vunpack.c.h.b16 %v377
    %v721 = vunpack.c.l.b16 %v378
    %v722 = vunpack.c.h.b16 %v378
    %v723 = vunpack.c.l.b16 %v379
    %v724 = vunpack.c.h.b16 %v379
    %v725 = vunpack.c.l.b16 %v380
    %v726 = vunpack.c.h.b16 %v380
    %v727 = vunpack.c.l.b16 %v381
    %v728 = vunpack.c.h.b16 %v381
    %v729 = vunpack.c.l.b16 %v382
    %v730 = vunpack.c.h.b16 %v382
    %v731 = vunpack.c.l.b16 %v383
    %v732 = vunpack.c.h.b16 %v383
    %v733 = vunpack.c.l.b16 %v384
    %v734 = vunpack.c.h.b16 %v384
    %v735 = vunpack.c.l.b16 %v385
    %v736 = vunpack.c.h.b16 %v385
    %v737 = vunpack.c.l.b16 %v386
    %v738 = vunpack.c.h.b16 %v386
    %v739 = vunpack.c.l.b16 %v387
    %v740 = vunpack.c.h.b16 %v387
    %v741 = vunpack.c.l.b16 %v388
    %v742 = vunpack.c.h.b16 %v388
    %v743 = vunpack.c.l.b16 %v389
    %v744 = vunpack.c.h.b16 %v389
    %v745 = vunpack.c.l.b16 %v390
    %v746 = vunpack.c.h.b16 %v390
    %v747 = vunpack.c.l.b16 %v391
    %v748 = vunpack.c.h.b16 %v391
    %v749 = vunpack.c.l.b16 %v392
    %v750 = vunpack.c.h.b16 %v392
    %v751 = vunpack.c.l.b16 %v393
    %v752 = vunpack.c.h.b16 %v393
    %v753 = vunpack.c.l.b16 %v394
    %v754 = vunpack.c.h.b16 %v394
    %v755 = vunpack.c.l.b16 %v395
    %v756 = vunpack.c.h.b16 %v395
    %v757 = vunpack.c.l.b16 %v396
    %v758 = vunpack.c.h.b16 %v396
    %v759 = vunpack.c.l.b16 %v397
    %v760 = vunpack.c.h.b16 %v397
    %v761 = vunpack.c.l.b16 %v398
    %v762 = vunpack.c.h.b16 %v398
    %v763 = vunpack.c.l.b16 %v399
    %v764 = vunpack.c.h.b16 %v399
    %v765 = vunpack.c.l.b16 %v400
    %v766 = vunpack.c.h.b16 %v400
    %v767 = vunpack.c.l.b16 %v401
    %v768 = vunpack.c.h.b16 %v401
    %v769 = vunpack.c.l.b16 %v402
    %v770 = vunpack.c.h.b16 %v402
    %v771 = vunpack.c.l.b16 %v403
    %v772 = vunpack.c.h.b16 %v403
    %v773 = vunpack.c.l.b16 %v404
    %v774 = vunpack.c.h.b16 %v404
    %v775 = vunpack.c.l.b16 %v405
    %v776 = vunpack.c.h.b16 %v405
    %v777 = vunpack.c.l.b16 %v406
    %v778 = vunpack.c.h.b16 %v406
    %v779 = vunpack.c.l.b16 %v407
    %v780 = vunpack.c.h.b16 %v407
    %v781 = vunpack.c.l.b16 %v408
    %v782 = vunpack.c.h.b16 %v408
    %v783 = vunpack.c.l.b16 %v409
    %v784 = vunpack.c.h.b16 %v409
    %v785 = vunpack.c.l.b16 %v410
    %v786 = vunpack.c.h.b16 %v410
    %v787 = vunpack.c.l.b16 %v411
    %v788 = vunpack.c.h.b16 %v411
    %v789 = vunpack.c.l.b16 %v412
    %v790 = vunpack.c.h.b16 %v412
    %v791 = vunpack.c.l.b16 %v413
    %v792 = vunpack.c.h.b16 %v413
    %v793 = vunpack.c.l.b16 %v414
    %v794 = vunpack.c.h.b16 %v414
    %v795 = vunpack.c.l.b16 %v415
    %v796 = vunpack.c.h.b16 %v415
    %v797 = vunpack.c.l.b16 %v416
    %v798 = vunpack.c.h.b16 %v416
    %v799 = vunpack.c.l.b16 %v417
    %v800 = vunpack.c.h.b16 %v417
    %v801 = vunpack.c.l.b16 %v418
    %v802 = vunpack.c.h.b16 %v418
    %v803 = vunpack.c.l.b16 %v419
    %v804 = vunpack.c.h.b16 %v419
    %v805 = vunpack.c.l.b16 %v420
    %v806 = vunpack.c.h.b16 %v420
    %v807 = vunpack.c.l.b16 %v421
    %v808 = vunpack.c.h.b16 %v421
    %v809 = vunpack.c.l.b16 %v422
    %v810 = vunpack.c.h.b16 %v422
    %v811 = vunpack.c.l.b16 %v423
    %v812 = vunpack.c.h.b16 %v423
    %v813 = vunpack.c.l.b16 %v424
    %v814 = vunpack.c.h.b16 %v424
    %v815 = vunpack.c.l.b16 %v425
    %v816 = vunpack.c.h.b16 %v425
    %v817 = vunpack.c.l.b16 %v426
    %v818 = vunpack.c.h.b16 %v426
    %v819 = vunpack.c.l.b16 %v427
    %v820 = vunpack.c.h.b16 %v427
    %v821 = vunpack.c.l.b16 %v428
    %v822 = vunpack.c.h.b16 %v428
    %v823 = vunpack.c.l.b16 %v429
    %v824 = vunpack.c.h.b16 %v429
    %v825 = vunpack.c.l.b16 %v430
    %v826 = vunpack.c.h.b16 %v430
    %v827 = vunpack.c.l.b16 %v431
    %v828 = vunpack.c.h.b16 %v431
    %v829 = vunpack.c.l.b16 %v432
    %v830 = vunpack.c.h.b16 %v432
    %v831 = vunpack.c.l.b16 %v433
    %v832 = vunpack.c.h.b16 %v433
    %v833 = vunpack.c.l.b16 %v434
    %v834 = vunpack.c.h.b16 %v434
    %v835 = vunpack.c.l.b16 %v435
    %v836 = vunpack.c.h.b16 %v435
    %v837 = vunpack.c.l.b16 %v436
    %v838 = vunpack.c.h.b16 %v436
    %v839 = vunpack.c.l.b16 %v437
    %v840 = vunpack.c.h.b16 %v437
    %v841 = vunpack.c.l.b16 %v438
    %v842 = vunpack.c.h.b16 %v438
    %v843 = vunpack.c.l.b16 %v439
    %v844 = vunpack.c.h.b16 %v439
    %v845 = vunpack.c.l.b16 %v440
    %v846 = vunpack.c.h.b16 %v440
    %v847 = vpack.c.b16 %v595, %v591
    %v848 = vpack.c.b16 %v596, %v592
    %v849 = vpack.c.b16 %v597, %v593
    %v850 = vpack.c.b16 %v598, %v594
    %v851 = vpack.c.b16 %v603, %v599
    %v852 = vpack.c.b16 %v604, %v600
    %v853 = vpack.c.b16 %v605, %v601
    %v854 = vpack.c.b16 %v606, %v602
    %v855 = vpack.c.b16 %v611, %v607
    %v856 = vpack.c.b16 %v612, %v608
    %v857 = vpack.c.b16 %v613, %v609
    %v858 = vpack.c.b16 %v614, %v610
    %v859 = vpack.c.b16 %v619, %v615
    %v860 = vpack.c.b16 %v620, %v616
    %v861 = vpack.c.b16 %v621, %v617
    %v862 = vpack.c.b16 %v622, %v618
    %v863 = vpack.c.b16 %v627, %v623
    %v864 = vpack.c.b16 %v628, %v624
    %v865 = vpack.c.b16 %v629, %v625
    %v866 = vpack.c.b16 %v630, %v626
    %v867 = vpack.c.b16 %v635, %v631
    %v868 = vpack.c.b16 %v636, %v632
    %v869 = vpack.c.b16 %v637, %v633
    %v870 = vpack.c.b16 %v638, %v634
    %v871 = vpack.c.b16 %v643, %v639
    %v872 = vpack.c.b16 %v644, %v640
    %v873 = vpack.c.b16 %v645, %v641
    %v874 = vpack.c.b16 %v646, %v642
    %v875 = vpack.c.b16 %v651, %v647
    %v876 = vpack.c.b16 %v652, %v648
    %v877 = vpack.c.b16 %v653, %v649
    %v878 = vpack.c.b16 %v654, %v650
    %v879 = vpack.c.b16 %v659, %v655
    %v880 = vpack.c.b16 %v660, %v656
    %v881 = vpack.c.b16 %v661, %v657
    %v882 = vpack.c.b16 %v662, %v658
    %v883 = vpack.c.b16 %v667, %v663
    %v884 = vpack.c.b16 %v668, %v664
    %v885 = vpack.c.b16 %v669, %v665
    %v886 = vpack.c.b16 %v670, %v666
    %v887 = vpack.c.b16 %v675, %v671
    %v888 = vpack.c.b16 %v676, %v672
    %v889 = vpack.c.b16 %v677, %v673
    %v890 = vpack.c.b16 %v678, %v674
    %v891 = vpack.c.b16 %v683, %v679
    %v892 = vpack.c.b16 %v684, %v680
    %v893 = vpack.c.b16 %v685, %v681
    %v894 = vpack.c.b16 %v686, %v682
    %v895 = vpack.c.b16 %v691, %v687
    %v896 = vpack.c.b16 %v692, %v688
    %v897 = vpack.c.b16 %v693, %v689
    %v898 = vpack.c.b16 %v694, %v690
    %v899 = vpack.c.b16 %v699, %v695
    %v900 = vpack.c.b16 %v700, %v696
    %v901 = vpack.c.b16 %v701, %v697
    %v902 = vpack.c.b16 %v702, %v698
    %v903 = vpack.c.b16 %v707, %v703
    %v904 = vpack.c.b16 %v708, %v704
    %v905 = vpack.c.b16 %v709, %v705
    %v906 = vpack.c.b16 %v710, %v706
    %v907 = vpack.c.b16 %v715, %v711
    %v908 = vpack.c.b16 %v716, %v712
    %v909 = vpack.c.b16 %v717, %v713
    %v910 = vpack.c.b16 %v718, %v714
    %v911 = vpack.c.b16 %v723, %v719
    %v912 = vpack.c.b16 %v724, %v720
    %v913 = vpack.c.b16 %v725, %v721
    %v914 = vpack.c.b16 %v726, %v722
    %v915 = vpack.c.b16 %v731, %v727
    %v916 = vpack.c.b16 %v732, %v728
    %v917 = vpack.c.b16 %v733, %v729
    %v918 = vpack.c.b16 %v734, %v730
    %v919 = vpack.c.b16 %v739, %v735
    %v920 = vpack.c.b16 %v740, %v736
    %v921 = vpack.c.b16 %v741, %v737
    %v922 = vpack.c.b16 %v742, %v738
    %v923 = vpack.c.b16 %v747, %v743
    %v924 = vpack.c.b16 %v748, %v744
    %v925 = vpack.c.b16 %v749, %v745
    %v926 = vpack.c.b16 %v750, %v746
    %v927 = vpack.c.b16 %v755, %v751
    %v928 = vpack.c.b16 %v756, %v752
    %v929 = vpack.c.b16 %v757, %v753
    %v930 = vpack.c.b16 %v758, %v754
    %v931 = vpack.c.b16 %v763, %v759
    %v932 = vpack.c.b16 %v764, %v760
    %v933 = vpack.c.b16 %v765, %v761
    %v934 = vpack.c.b16 %v766, %v762
    %v935 = vpack.c.b16 %v771, %v767
    %v936 = vpack.c.b16 %v772, %v768
    %v937 = vpack.c.b16 %v773, %v769
    %v938 = vpack.c.b16 %v774, %v770
    %v939 = vpack.c.b16 %v779, %v775
    %v940 = vpack.c.b16 %v780, %v776
    %v941 = vpack.c.b16 %v781, %v777
    %v942 = vpack.c.b16 %v782, %v778
    %v943 = vpack.c.b16 %v787, %v783
    %v944 = vpack.c.b16 %v788, %v784
    %v945 = vpack.c.b16 %v789, %v785
    %v946 = vpack.c.b16 %v790, %v786
    %v947 = vpack.c.b16 %v795, %v791
    %v948 = vpack.c.b16 %v796, %v792
    %v949 = vpack.c.b16 %v797, %v793
    %v950 = vpack.c.b16 %v798, %v794
    %v951 = vpack.c.b16 %v803, %v799
    %v952 = vpack.c.b16 %v804, %v800
    %v953 = vpack.c.b16 %v805, %v801
    %v954 = vpack.c.b16 %v806, %v802
    %v955 = vpack.c.b16 %v811, %v807
    %v956 = vpack.c.b16 %v812, %v808
    %v957 = vpack.c.b16 %v813, %v809
    %v958 = vpack.c.b16 %v814, %v810
    %v959 = vpack.c.b16 %v819, %v815
    %v960 = vpack.c.b16 %v820, %v816
    %v961 = vpack.c.b16 %v821, %v817
    %v962 = vpack.c.b16 %v822, %v818
    %v963 = vpack.c.b16 %v827, %v823
    %v964 = vpack.c.b16 %v828, %v824
    %v965 = vpack.c.b16 %v829, %v825
    %v966 = vpack.c.b16 %v830, %v826
    %v967 = vpack.c.b16 %v835, %v831
    %v968 = vpack.c.b16 %v836, %v832
    %v969 = vpack.c.b16 %v837, %v833
    %v970 = vpack.c.b16 %v838, %v834
    %v971 = vpack.c.b16 %v843, %v839
    %v972 = vpack.c.b16 %v844, %v840
    %v973 = vpack.c.b16 %v845, %v841
    %v974 = vpack.c.b16 %v846, %v842
    %1103 = vmatprep.subr.bf16.mxu0 %v848
    %1104 = vmatpush1.bf16.msra.mxu0 %v847
    %1105 = vmatprep.subr.bf16.mxu0 %v852
    %1106 = vmatpush1.bf16.msra.mxu0 %v851
    %1107 = vmatprep.subr.bf16.mxu0 %v856
    %1108 = vmatpush1.bf16.msra.mxu0 %v855
    %1109 = vmatprep.subr.bf16.mxu0 %v860
    %1110 = vmatpush1.bf16.msra.mxu0 %v859
    %1111 = vmatprep.subr.bf16.mxu0 %v864
    %1112 = vmatpush1.bf16.msra.mxu0 %v863
    %1113 = vmatprep.subr.bf16.mxu0 %v868
    %1114 = vmatpush1.bf16.msra.mxu0 %v867
    %1115 = vmatprep.subr.bf16.mxu0 %v872
    %1116 = vmatpush1.bf16.msra.mxu0 %v871
    %1117 = vmatprep.subr.bf16.mxu0 %v876
    %1118 = vmatpush1.bf16.msra.mxu0 %v875
    %1119 = vmatprep.subr.bf16.mxu0 %v880
    %1120 = vmatpush1.bf16.msra.mxu0 %v879
    %1121 = vmatprep.subr.bf16.mxu0 %v884
    %1122 = vmatpush1.bf16.msra.mxu0 %v883
    %1123 = vmatprep.subr.bf16.mxu0 %v888
    %1124 = vmatpush1.bf16.msra.mxu0 %v887
    %1125 = vmatprep.subr.bf16.mxu0 %v892
    %1126 = vmatpush1.bf16.msra.mxu0 %v891
    %1127 = vmatprep.subr.bf16.mxu0 %v896
    %1128 = vmatpush1.bf16.msra.mxu0 %v895
    %1129 = vmatprep.subr.bf16.mxu0 %v900
    %1130 = vmatpush1.bf16.msra.mxu0 %v899
    %1131 = vmatprep.subr.bf16.mxu0 %v904
    %1132 = vmatpush1.bf16.msra.mxu0 %v903
    %1133 = vmatprep.subr.bf16.mxu0 %v908
    %1134 = vmatpush1.bf16.msra.mxu0 %v907
    %1135 = vmatprep.mubr.bf16.mxu0 %v310
    %1136 = vmatmul.mubr.bf16.gmra.mrb[0].mxu0 %v309
    %v1137 = vpop.f32.mrb[0].mxu0
    %v1138 = vadd.f32 %v446, %v1137
    %v1139 = vpop.f32.mrb[0].mxu0
    %v1140 = vadd.f32 %v450, %v1139
    %v1141 = vpop.f32.mrb[0].mxu0
    %v1142 = vpop.f32.mrb[0].mxu0
    %1143 = vdwg.mxu0
    %1144 = vmatprep.subr.bf16.mxu0 %v912
    %1145 = vmatpush1.bf16.msra.mxu0 %v911
    %1146 = vmatprep.subr.bf16.mxu0 %v916
    %1147 = vmatpush1.bf16.msra.mxu0 %v915
    %1148 = vmatprep.subr.bf16.mxu0 %v920
    %1149 = vmatpush1.bf16.msra.mxu0 %v919
    %1150 = vmatprep.subr.bf16.mxu0 %v924
    %1151 = vmatpush1.bf16.msra.mxu0 %v923
    %1152 = vmatprep.subr.bf16.mxu0 %v928
    %1153 = vmatpush1.bf16.msra.mxu0 %v927
    %1154 = vmatprep.subr.bf16.mxu0 %v932
    %1155 = vmatpush1.bf16.msra.mxu0 %v931
    %1156 = vmatprep.subr.bf16.mxu0 %v936
    %1157 = vmatpush1.bf16.msra.mxu0 %v935
    %1158 = vmatprep.subr.bf16.mxu0 %v940
    %1159 = vmatpush1.bf16.msra.mxu0 %v939
    %1160 = vmatprep.subr.bf16.mxu0 %v944
    %1161 = vmatpush1.bf16.msra.mxu0 %v943
    %1162 = vmatprep.subr.bf16.mxu0 %v948
    %1163 = vmatpush1.bf16.msra.mxu0 %v947
    %1164 = vmatprep.subr.bf16.mxu0 %v952
    %1165 = vmatpush1.bf16.msra.mxu0 %v951
    %1166 = vmatprep.subr.bf16.mxu0 %v956
    %1167 = vmatpush1.bf16.msra.mxu0 %v955
    %1168 = vmatprep.subr.bf16.mxu0 %v960
    %1169 = vmatpush1.bf16.msra.mxu0 %v959
    %1170 = vmatprep.subr.bf16.mxu0 %v964
    %1171 = vmatpush1.bf16.msra.mxu0 %v963
    %1172 = vmatprep.subr.bf16.mxu0 %v968
    %1173 = vmatpush1.bf16.msra.mxu0 %v967
    %1174 = vmatprep.subr.bf16.mxu0 %v972
    %1175 = vmatpush1.bf16.msra.mxu0 %v971
    %1176 = vmatprep.mubr.bf16.mxu0 %v312
    %1177 = vmatmul.mubr.bf16.gmra.mrb[0].mxu0 %v311
    %v1178 = vpop.f32.mrb[0].mxu0
    %v1179 = vadd.f32 %v1138, %v1178
    %v1180 = vpop.f32.mrb[0].mxu0
    %v1181 = vadd.f32 %v1140, %v1180
    %v1182 = vpop.f32.mrb[0].mxu0
    %v1183 = vpop.f32.mrb[0].mxu0
    %1184 = vdwg.mxu0
    %1185 = vmatprep.subr.bf16.mxu0 %v850
    %1186 = vmatpush1.bf16.msra.mxu0 %v849
    %1187 = vmatprep.subr.bf16.mxu0 %v854
    %1188 = vmatpush1.bf16.msra.mxu0 %v853
    %1189 = vmatprep.subr.bf16.mxu0 %v858
    %1190 = vmatpush1.bf16.msra.mxu0 %v857
    %1191 = vmatprep.subr.bf16.mxu0 %v862
    %1192 = vmatpush1.bf16.msra.mxu0 %v861
    %1193 = vmatprep.subr.bf16.mxu0 %v866
    %1194 = vmatpush1.bf16.msra.mxu0 %v865
    %1195 = vmatprep.subr.bf16.mxu0 %v870
    %1196 = vmatpush1.bf16.msra.mxu0 %v869
    %1197 = vmatprep.subr.bf16.mxu0 %v874
    %1198 = vmatpush1.bf16.msra.mxu0 %v873
    %1199 = vmatprep.subr.bf16.mxu0 %v878
    %1200 = vmatpush1.bf16.msra.mxu0 %v877
    %1201 = vmatprep.subr.bf16.mxu0 %v882
    %1202 = vmatpush1.bf16.msra.mxu0 %v881
    %1203 = vmatprep.subr.bf16.mxu0 %v886
    %1204 = vmatpush1.bf16.msra.mxu0 %v885
    %1205 = vmatprep.subr.bf16.mxu0 %v890
    %1206 = vmatpush1.bf16.msra.mxu0 %v889
    %1207 = vmatprep.subr.bf16.mxu0 %v894
    %1208 = vmatpush1.bf16.msra.mxu0 %v893
    %1209 = vmatprep.subr.bf16.mxu0 %v898
    %1210 = vmatpush1.bf16.msra.mxu0 %v897
    %1211 = vmatprep.subr.bf16.mxu0 %v902
    %1212 = vmatpush1.bf16.msra.mxu0 %v901
    %1213 = vmatprep.subr.bf16.mxu0 %v906
    %1214 = vmatpush1.bf16.msra.mxu0 %v905
    %1215 = vmatprep.subr.bf16.mxu0 %v910
    %1216 = vmatpush1.bf16.msra.mxu0 %v909
    %1217 = vmatprep.mubr.bf16.mxu0 %v310
    %1218 = vmatmul.mubr.bf16.gmra.mrb[0].mxu0 %v309
    %v1219 = vpop.f32.mrb[0].mxu0
    %v1220 = vadd.f32 %v454, %v1219
    %v1221 = vpop.f32.mrb[0].mxu0
    %v1222 = vadd.f32 %v458, %v1221
    %v1223 = vpop.f32.mrb[0].mxu0
    %v1224 = vpop.f32.mrb[0].mxu0
    %1225 = vdwg.mxu0
    %1226 = vmatprep.subr.bf16.mxu0 %v914
    %1227 = vmatpush1.bf16.msra.mxu0 %v913
    %1228 = vmatprep.subr.bf16.mxu0 %v918
    %1229 = vmatpush1.bf16.msra.mxu0 %v917
    %1230 = vmatprep.subr.bf16.mxu0 %v922
    %1231 = vmatpush1.bf16.msra.mxu0 %v921
    %1232 = vmatprep.subr.bf16.mxu0 %v926
    %1233 = vmatpush1.bf16.msra.mxu0 %v925
    %1234 = vmatprep.subr.bf16.mxu0 %v930
    %1235 = vmatpush1.bf16.msra.mxu0 %v929
    %1236 = vmatprep.subr.bf16.mxu0 %v934
    %1237 = vmatpush1.bf16.msra.mxu0 %v933
    %1238 = vmatprep.subr.bf16.mxu0 %v938
    %1239 = vmatpush1.bf16.msra.mxu0 %v937
    %1240 = vmatprep.subr.bf16.mxu0 %v942
    %1241 = vmatpush1.bf16.msra.mxu0 %v941
    %1242 = vmatprep.subr.bf16.mxu0 %v946
    %1243 = vmatpush1.bf16.msra.mxu0 %v945
    %1244 = vmatprep.subr.bf16.mxu0 %v950
    %1245 = vmatpush1.bf16.msra.mxu0 %v949
    %1246 = vmatprep.subr.bf16.mxu0 %v954
    %1247 = vmatpush1.bf16.msra.mxu0 %v953
    %1248 = vmatprep.subr.bf16.mxu0 %v958
    %1249 = vmatpush1.bf16.msra.mxu0 %v957
    %1250 = vmatprep.subr.bf16.mxu0 %v962
    %1251 = vmatpush1.bf16.msra.mxu0 %v961
    %1252 = vmatprep.subr.bf16.mxu0 %v966
    %1253 = vmatpush1.bf16.msra.mxu0 %v965
    %1254 = vmatprep.subr.bf16.mxu0 %v970
    %1255 = vmatpush1.bf16.msra.mxu0 %v969
    %1256 = vmatprep.subr.bf16.mxu0 %v974
    %1257 = vmatpush1.bf16.msra.mxu0 %v973
    %1258 = vmatprep.mubr.bf16.mxu0 %v312
    %1259 = vmatmul.mubr.bf16.gmra.mrb[0].mxu0 %v311
    %v1260 = vpop.f32.mrb[0].mxu0
    %v1261 = vadd.f32 %v1220, %v1260
    %v1262 = vpop.f32.mrb[0].mxu0
    %v1263 = vadd.f32 %v1222, %v1262
    %v1264 = vpop.f32.mrb[0].mxu0
    %v1265 = vpop.f32.mrb[0].mxu0
    %1266 = vdwg.mxu0
    %v1267 = vmax.f32 %v1179, 0.0
    %v1268 = vmax.f32 %v1181, 0.0
    %v1269 = vmax.f32 %v1261, 0.0
    %v1270 = vmax.f32 %v1263, 0.0
    %v1271 = vpack.c.bf16 %v1267, %v1267
    %v1272 = vpack.c.bf16 %v1268, %v1268
    %v1273 = vpack.c.bf16 %v1269, %v1269
    %v1274 = vpack.c.bf16 %v1270, %v1270
    %v1275 = vld [vmem:[#allocation8] sm:$0xff]
    %v1276 = vld [vmem:[#allocation8 + $0x8] sm:$0xff]
    %v1277 = vld [vmem:[#allocation8 + $0x10] sm:$0xff]
    %v1278 = vld [vmem:[#allocation8 + $0x18] sm:$0xff]
    %v1279 = vld [vmem:[#allocation8 + $0x20] sm:$0xff]
    %v1280 = vld [vmem:[#allocation8 + $0x28] sm:$0xff]
    %v1281 = vld [vmem:[#allocation8 + $0x30] sm:$0xff]
    %v1282 = vld [vmem:[#allocation8 + $0x38] sm:$0xff]
    %v1283 = vld [vmem:[#allocation8 + $0x40] sm:$0xff]
    %v1284 = vld [vmem:[#allocation8 + $0x48] sm:$0xff]
    %v1285 = vld [vmem:[#allocation8 + $0x50] sm:$0xff]
    %v1286 = vld [vmem:[#allocation8 + $0x58] sm:$0xff]
    %v1287 = vld [vmem:[#allocation8 + $0x60] sm:$0xff]
    %v1288 = vld [vmem:[#allocation8 + $0x68] sm:$0xff]
    %v1289 = vld [vmem:[#allocation8 + $0x70] sm:$0xff]
    %v1290 = vld [vmem:[#allocation8 + $0x78] sm:$0xff]
    %v1291 = vld [vmem:[#allocation8 + $0x80] sm:$0xff]
    %v1292 = vld [vmem:[#allocation8 + $0x88] sm:$0xff]
    %v1293 = vld [vmem:[#allocation8 + $0x90] sm:$0xff]
    %v1294 = vld [vmem:[#allocation8 + $0x98] sm:$0xff]
    %v1295 = vld [vmem:[#allocation8 + $0xa0] sm:$0xff]
    %v1296 = vld [vmem:[#allocation8 + $0xa8] sm:$0xff]
    %v1297 = vld [vmem:[#allocation8 + $0xb0] sm:$0xff]
    %v1298 = vld [vmem:[#allocation8 + $0xb8] sm:$0xff]
    %v1299 = vld [vmem:[#allocation8 + $0xc0] sm:$0xff]
    %v1300 = vld [vmem:[#allocation8 + $0xc8] sm:$0xff]
    %v1301 = vld [vmem:[#allocation8 + $0xd0] sm:$0xff]
    %v1302 = vld [vmem:[#allocation8 + $0xd8] sm:$0xff]
    %v1303 = vld [vmem:[#allocation8 + $0xe0] sm:$0xff]
    %v1304 = vld [vmem:[#allocation8 + $0xe8] sm:$0xff]
    %v1305 = vld [vmem:[#allocation8 + $0xf0] sm:$0xff]
    %v1306 = vld [vmem:[#allocation8 + $0xf8] sm:$0xff]
    %v1307 = vld [vmem:[#allocation8 + $0x100] sm:$0xff]
    %v1308 = vld [vmem:[#allocation8 + $0x108] sm:$0xff]
    %v1309 = vld [vmem:[#allocation8 + $0x110] sm:$0xff]
    %v1310 = vld [vmem:[#allocation8 + $0x118] sm:$0xff]
    %v1311 = vld [vmem:[#allocation8 + $0x120] sm:$0xff]
    %v1312 = vld [vmem:[#allocation8 + $0x128] sm:$0xff]
    %v1313 = vld [vmem:[#allocation8 + $0x130] sm:$0xff]
    %v1314 = vld [vmem:[#allocation8 + $0x138] sm:$0xff]
    %v1315 = vld [vmem:[#allocation8 + $0x140] sm:$0xff]
    %v1316 = vld [vmem:[#allocation8 + $0x148] sm:$0xff]
    %v1317 = vld [vmem:[#allocation8 + $0x150] sm:$0xff]
    %v1318 = vld [vmem:[#allocation8 + $0x158] sm:$0xff]
    %v1319 = vld [vmem:[#allocation8 + $0x160] sm:$0xff]
    %v1320 = vld [vmem:[#allocation8 + $0x168] sm:$0xff]
    %v1321 = vld [vmem:[#allocation8 + $0x170] sm:$0xff]
    %v1322 = vld [vmem:[#allocation8 + $0x178] sm:$0xff]
    %v1323 = vld [vmem:[#allocation8 + $0x180] sm:$0xff]
    %v1324 = vld [vmem:[#allocation8 + $0x188] sm:$0xff]
    %v1325 = vld [vmem:[#allocation8 + $0x190] sm:$0xff]
    %v1326 = vld [vmem:[#allocation8 + $0x198] sm:$0xff]
    %v1327 = vld [vmem:[#allocation8 + $0x1a0] sm:$0xff]
    %v1328 = vld [vmem:[#allocation8 + $0x1a8] sm:$0xff]
    %v1329 = vld [vmem:[#allocation8 + $0x1b0] sm:$0xff]
    %v1330 = vld [vmem:[#allocation8 + $0x1b8] sm:$0xff]
    %v1331 = vld [vmem:[#allocation8 + $0x1c0] sm:$0xff]
    %v1332 = vld [vmem:[#allocation8 + $0x1c8] sm:$0xff]
    %v1333 = vld [vmem:[#allocation8 + $0x1d0] sm:$0xff]
    %v1334 = vld [vmem:[#allocation8 + $0x1d8] sm:$0xff]
    %v1335 = vld [vmem:[#allocation8 + $0x1e0] sm:$0xff]
    %v1336 = vld [vmem:[#allocation8 + $0x1e8] sm:$0xff]
    %v1337 = vld [vmem:[#allocation8 + $0x1f0] sm:$0xff]
    %v1338 = vld [vmem:[#allocation8 + $0x1f8] sm:$0xff]
    %v1339 = vld [vmem:[#allocation8 + $0x200] sm:$0xff]
    %v1340 = vld [vmem:[#allocation8 + $0x208] sm:$0xff]
    %v1341 = vld [vmem:[#allocation8 + $0x210] sm:$0xff]
    %v1342 = vld [vmem:[#allocation8 + $0x218] sm:$0xff]
    %v1343 = vld [vmem:[#allocation8 + $0x220] sm:$0xff]
    %v1344 = vld [vmem:[#allocation8 + $0x228] sm:$0xff]
    %v1345 = vld [vmem:[#allocation8 + $0x230] sm:$0xff]
    %v1346 = vld [vmem:[#allocation8 + $0x238] sm:$0xff]
    %v1347 = vld [vmem:[#allocation8 + $0x240] sm:$0xff]
    %v1348 = vld [vmem:[#allocation8 + $0x248] sm:$0xff]
    %v1349 = vld [vmem:[#allocation8 + $0x250] sm:$0xff]
    %v1350 = vld [vmem:[#allocation8 + $0x258] sm:$0xff]
    %v1351 = vld [vmem:[#allocation8 + $0x260] sm:$0xff]
    %v1352 = vld [vmem:[#allocation8 + $0x268] sm:$0xff]
    %v1353 = vld [vmem:[#allocation8 + $0x270] sm:$0xff]
    %v1354 = vld [vmem:[#allocation8 + $0x278] sm:$0xff]
    %v1355 = vld [vmem:[#allocation8 + $0x280] sm:$0xff]
    %v1356 = vld [vmem:[#allocation8 + $0x288] sm:$0xff]
    %v1357 = vld [vmem:[#allocation8 + $0x290] sm:$0xff]
    %v1358 = vld [vmem:[#allocation8 + $0x298] sm:$0xff]
    %v1359 = vld [vmem:[#allocation8 + $0x2a0] sm:$0xff]
    %v1360 = vld [vmem:[#allocation8 + $0x2a8] sm:$0xff]
    %v1361 = vld [vmem:[#allocation8 + $0x2b0] sm:$0xff]
    %v1362 = vld [vmem:[#allocation8 + $0x2b8] sm:$0xff]
    %v1363 = vld [vmem:[#allocation8 + $0x2c0] sm:$0xff]
    %v1364 = vld [vmem:[#allocation8 + $0x2c8] sm:$0xff]
    %v1365 = vld [vmem:[#allocation8 + $0x2d0] sm:$0xff]
    %v1366 = vld [vmem:[#allocation8 + $0x2d8] sm:$0xff]
    %v1367 = vld [vmem:[#allocation8 + $0x2e0] sm:$0xff]
    %v1368 = vld [vmem:[#allocation8 + $0x2e8] sm:$0xff]
    %v1369 = vld [vmem:[#allocation8 + $0x2f0] sm:$0xff]
    %v1370 = vld [vmem:[#allocation8 + $0x2f8] sm:$0xff]
    %v1371 = vld [vmem:[#allocation8 + $0x300] sm:$0xff]
    %v1372 = vld [vmem:[#allocation8 + $0x308] sm:$0xff]
    %v1373 = vld [vmem:[#allocation8 + $0x310] sm:$0xff]
    %v1374 = vld [vmem:[#allocation8 + $0x318] sm:$0xff]
    %v1375 = vld [vmem:[#allocation8 + $0x320] sm:$0xff]
    %v1376 = vld [vmem:[#allocation8 + $0x328] sm:$0xff]
    %v1377 = vld [vmem:[#allocation8 + $0x330] sm:$0xff]
    %v1378 = vld [vmem:[#allocation8 + $0x338] sm:$0xff]
    %v1379 = vld [vmem:[#allocation8 + $0x340] sm:$0xff]
    %v1380 = vld [vmem:[#allocation8 + $0x348] sm:$0xff]
    %v1381 = vld [vmem:[#allocation8 + $0x350] sm:$0xff]
    %v1382 = vld [vmem:[#allocation8 + $0x358] sm:$0xff]
    %v1383 = vld [vmem:[#allocation8 + $0x360] sm:$0xff]
    %v1384 = vld [vmem:[#allocation8 + $0x368] sm:$0xff]
    %v1385 = vld [vmem:[#allocation8 + $0x370] sm:$0xff]
    %v1386 = vld [vmem:[#allocation8 + $0x378] sm:$0xff]
    %v1387 = vld [vmem:[#allocation8 + $0x380] sm:$0xff]
    %v1388 = vld [vmem:[#allocation8 + $0x388] sm:$0xff]
    %v1389 = vld [vmem:[#allocation8 + $0x390] sm:$0xff]
    %v1390 = vld [vmem:[#allocation8 + $0x398] sm:$0xff]
    %v1391 = vld [vmem:[#allocation8 + $0x3a0] sm:$0xff]
    %v1392 = vld [vmem:[#allocation8 + $0x3a8] sm:$0xff]
    %v1393 = vld [vmem:[#allocation8 + $0x3b0] sm:$0xff]
    %v1394 = vld [vmem:[#allocation8 + $0x3b8] sm:$0xff]
    %v1395 = vld [vmem:[#allocation8 + $0x3c0] sm:$0xff]
    %v1396 = vld [vmem:[#allocation8 + $0x3c8] sm:$0xff]
    %v1397 = vld [vmem:[#allocation8 + $0x3d0] sm:$0xff]
    %v1398 = vld [vmem:[#allocation8 + $0x3d8] sm:$0xff]
    %v1399 = vld [vmem:[#allocation8 + $0x3e0] sm:$0xff]
    %v1400 = vld [vmem:[#allocation8 + $0x3e8] sm:$0xff]
    %v1401 = vld [vmem:[#allocation8 + $0x3f0] sm:$0xff]
    %v1402 = vld [vmem:[#allocation8 + $0x3f8] sm:$0xff]
    %v1403 = vld [vmem:[%s6] sm:$0xf]
    %v1405 = vlaneseq
    %v1406 = vshrl.u32 %v1405, 7
    %v1407 = vsub.s32 0, %v1406
    %v1408 = vrot.slane %v1403, %v1407
    %v1409 = vlaneseq
    %v1410 = vshrl.u32 %v1409, 7
    %v1411 = vsub.s32 1, %v1410
    %v1412 = vrot.slane %v1403, %v1411
    %v1413 = vlaneseq
    %v1414 = vshrl.u32 %v1413, 7
    %v1415 = vsub.s32 2, %v1414
    %v1416 = vrot.slane %v1403, %v1415
    %v1417 = vlaneseq
    %v1418 = vshrl.u32 %v1417, 7
    %v1419 = vsub.s32 3, %v1418
    %v1420 = vrot.slane %v1403, %v1419
    %v1553 = vunpack.c.l.b16 %v1275
    %v1554 = vunpack.c.h.b16 %v1275
    %v1555 = vunpack.c.l.b16 %v1276
    %v1556 = vunpack.c.h.b16 %v1276
    %v1557 = vunpack.c.l.b16 %v1277
    %v1558 = vunpack.c.h.b16 %v1277
    %v1559 = vunpack.c.l.b16 %v1278
    %v1560 = vunpack.c.h.b16 %v1278
    %v1561 = vunpack.c.l.b16 %v1279
    %v1562 = vunpack.c.h.b16 %v1279
    %v1563 = vunpack.c.l.b16 %v1280
    %v1564 = vunpack.c.h.b16 %v1280
    %v1565 = vunpack.c.l.b16 %v1281
    %v1566 = vunpack.c.h.b16 %v1281
    %v1567 = vunpack.c.l.b16 %v1282
    %v1568 = vunpack.c.h.b16 %v1282
    %v1569 = vunpack.c.l.b16 %v1283
    %v1570 = vunpack.c.h.b16 %v1283
    %v1571 = vunpack.c.l.b16 %v1284
    %v1572 = vunpack.c.h.b16 %v1284
    %v1573 = vunpack.c.l.b16 %v1285
    %v1574 = vunpack.c.h.b16 %v1285
    %v1575 = vunpack.c.l.b16 %v1286
    %v1576 = vunpack.c.h.b16 %v1286
    %v1577 = vunpack.c.l.b16 %v1287
    %v1578 = vunpack.c.h.b16 %v1287
    %v1579 = vunpack.c.l.b16 %v1288
    %v1580 = vunpack.c.h.b16 %v1288
    %v1581 = vunpack.c.l.b16 %v1289
    %v1582 = vunpack.c.h.b16 %v1289
    %v1583 = vunpack.c.l.b16 %v1290
    %v1584 = vunpack.c.h.b16 %v1290
    %v1585 = vunpack.c.l.b16 %v1291
    %v1586 = vunpack.c.h.b16 %v1291
    %v1587 = vunpack.c.l.b16 %v1292
    %v1588 = vunpack.c.h.b16 %v1292
    %v1589 = vunpack.c.l.b16 %v1293
    %v1590 = vunpack.c.h.b16 %v1293
    %v1591 = vunpack.c.l.b16 %v1294
    %v1592 = vunpack.c.h.b16 %v1294
    %v1593 = vunpack.c.l.b16 %v1295
    %v1594 = vunpack.c.h.b16 %v1295
    %v1595 = vunpack.c.l.b16 %v1296
    %v1596 = vunpack.c.h.b16 %v1296
    %v1597 = vunpack.c.l.b16 %v1297
    %v1598 = vunpack.c.h.b16 %v1297
    %v1599 = vunpack.c.l.b16 %v1298
    %v1600 = vunpack.c.h.b16 %v1298
    %v1601 = vunpack.c.l.b16 %v1299
    %v1602 = vunpack.c.h.b16 %v1299
    %v1603 = vunpack.c.l.b16 %v1300
    %v1604 = vunpack.c.h.b16 %v1300
    %v1605 = vunpack.c.l.b16 %v1301
    %v1606 = vunpack.c.h.b16 %v1301
    %v1607 = vunpack.c.l.b16 %v1302
    %v1608 = vunpack.c.h.b16 %v1302
    %v1609 = vunpack.c.l.b16 %v1303
    %v1610 = vunpack.c.h.b16 %v1303
    %v1611 = vunpack.c.l.b16 %v1304
    %v1612 = vunpack.c.h.b16 %v1304
    %v1613 = vunpack.c.l.b16 %v1305
    %v1614 = vunpack.c.h.b16 %v1305
    %v1615 = vunpack.c.l.b16 %v1306
    %v1616 = vunpack.c.h.b16 %v1306
    %v1617 = vunpack.c.l.b16 %v1307
    %v1618 = vunpack.c.h.b16 %v1307
    %v1619 = vunpack.c.l.b16 %v1308
    %v1620 = vunpack.c.h.b16 %v1308
    %v1621 = vunpack.c.l.b16 %v1309
    %v1622 = vunpack.c.h.b16 %v1309
    %v1623 = vunpack.c.l.b16 %v1310
    %v1624 = vunpack.c.h.b16 %v1310
    %v1625 = vunpack.c.l.b16 %v1311
    %v1626 = vunpack.c.h.b16 %v1311
    %v1627 = vunpack.c.l.b16 %v1312
    %v1628 = vunpack.c.h.b16 %v1312
    %v1629 = vunpack.c.l.b16 %v1313
    %v1630 = vunpack.c.h.b16 %v1313
    %v1631 = vunpack.c.l.b16 %v1314
    %v1632 = vunpack.c.h.b16 %v1314
    %v1633 = vunpack.c.l.b16 %v1315
    %v1634 = vunpack.c.h.b16 %v1315
    %v1635 = vunpack.c.l.b16 %v1316
    %v1636 = vunpack.c.h.b16 %v1316
    %v1637 = vunpack.c.l.b16 %v1317
    %v1638 = vunpack.c.h.b16 %v1317
    %v1639 = vunpack.c.l.b16 %v1318
    %v1640 = vunpack.c.h.b16 %v1318
    %v1641 = vunpack.c.l.b16 %v1319
    %v1642 = vunpack.c.h.b16 %v1319
    %v1643 = vunpack.c.l.b16 %v1320
    %v1644 = vunpack.c.h.b16 %v1320
    %v1645 = vunpack.c.l.b16 %v1321
    %v1646 = vunpack.c.h.b16 %v1321
    %v1647 = vunpack.c.l.b16 %v1322
    %v1648 = vunpack.c.h.b16 %v1322
    %v1649 = vunpack.c.l.b16 %v1323
    %v1650 = vunpack.c.h.b16 %v1323
    %v1651 = vunpack.c.l.b16 %v1324
    %v1652 = vunpack.c.h.b16 %v1324
    %v1653 = vunpack.c.l.b16 %v1325
    %v1654 = vunpack.c.h.b16 %v1325
    %v1655 = vunpack.c.l.b16 %v1326
    %v1656 = vunpack.c.h.b16 %v1326
    %v1657 = vunpack.c.l.b16 %v1327
    %v1658 = vunpack.c.h.b16 %v1327
    %v1659 = vunpack.c.l.b16 %v1328
    %v1660 = vunpack.c.h.b16 %v1328
    %v1661 = vunpack.c.l.b16 %v1329
    %v1662 = vunpack.c.h.b16 %v1329
    %v1663 = vunpack.c.l.b16 %v1330
    %v1664 = vunpack.c.h.b16 %v1330
    %v1665 = vunpack.c.l.b16 %v1331
    %v1666 = vunpack.c.h.b16 %v1331
    %v1667 = vunpack.c.l.b16 %v1332
    %v1668 = vunpack.c.h.b16 %v1332
    %v1669 = vunpack.c.l.b16 %v1333
    %v1670 = vunpack.c.h.b16 %v1333
    %v1671 = vunpack.c.l.b16 %v1334
    %v1672 = vunpack.c.h.b16 %v1334
    %v1673 = vunpack.c.l.b16 %v1335
    %v1674 = vunpack.c.h.b16 %v1335
    %v1675 = vunpack.c.l.b16 %v1336
    %v1676 = vunpack.c.h.b16 %v1336
    %v1677 = vunpack.c.l.b16 %v1337
    %v1678 = vunpack.c.h.b16 %v1337
    %v1679 = vunpack.c.l.b16 %v1338
    %v1680 = vunpack.c.h.b16 %v1338
    %v1681 = vunpack.c.l.b16 %v1339
    %v1682 = vunpack.c.h.b16 %v1339
    %v1683 = vunpack.c.l.b16 %v1340
    %v1684 = vunpack.c.h.b16 %v1340
    %v1685 = vunpack.c.l.b16 %v1341
    %v1686 = vunpack.c.h.b16 %v1341
    %v1687 = vunpack.c.l.b16 %v1342
    %v1688 = vunpack.c.h.b16 %v1342
    %v1689 = vunpack.c.l.b16 %v1343
    %v1690 = vunpack.c.h.b16 %v1343
    %v1691 = vunpack.c.l.b16 %v1344
    %v1692 = vunpack.c.h.b16 %v1344
    %v1693 = vunpack.c.l.b16 %v1345
    %v1694 = vunpack.c.h.b16 %v1345
    %v1695 = vunpack.c.l.b16 %v1346
    %v1696 = vunpack.c.h.b16 %v1346
    %v1697 = vunpack.c.l.b16 %v1347
    %v1698 = vunpack.c.h.b16 %v1347
    %v1699 = vunpack.c.l.b16 %v1348
    %v1700 = vunpack.c.h.b16 %v1348
    %v1701 = vunpack.c.l.b16 %v1349
    %v1702 = vunpack.c.h.b16 %v1349
    %v1703 = vunpack.c.l.b16 %v1350
    %v1704 = vunpack.c.h.b16 %v1350
    %v1705 = vunpack.c.l.b16 %v1351
    %v1706 = vunpack.c.h.b16 %v1351
    %v1707 = vunpack.c.l.b16 %v1352
    %v1708 = vunpack.c.h.b16 %v1352
    %v1709 = vunpack.c.l.b16 %v1353
    %v1710 = vunpack.c.h.b16 %v1353
    %v1711 = vunpack.c.l.b16 %v1354
    %v1712 = vunpack.c.h.b16 %v1354
    %v1713 = vunpack.c.l.b16 %v1355
    %v1714 = vunpack.c.h.b16 %v1355
    %v1715 = vunpack.c.l.b16 %v1356
    %v1716 = vunpack.c.h.b16 %v1356
    %v1717 = vunpack.c.l.b16 %v1357
    %v1718 = vunpack.c.h.b16 %v1357
    %v1719 = vunpack.c.l.b16 %v1358
    %v1720 = vunpack.c.h.b16 %v1358
    %v1721 = vunpack.c.l.b16 %v1359
    %v1722 = vunpack.c.h.b16 %v1359
    %v1723 = vunpack.c.l.b16 %v1360
    %v1724 = vunpack.c.h.b16 %v1360
    %v1725 = vunpack.c.l.b16 %v1361
    %v1726 = vunpack.c.h.b16 %v1361
    %v1727 = vunpack.c.l.b16 %v1362
    %v1728 = vunpack.c.h.b16 %v1362
    %v1729 = vunpack.c.l.b16 %v1363
    %v1730 = vunpack.c.h.b16 %v1363
    %v1731 = vunpack.c.l.b16 %v1364
    %v1732 = vunpack.c.h.b16 %v1364
    %v1733 = vunpack.c.l.b16 %v1365
    %v1734 = vunpack.c.h.b16 %v1365
    %v1735 = vunpack.c.l.b16 %v1366
    %v1736 = vunpack.c.h.b16 %v1366
    %v1737 = vunpack.c.l.b16 %v1367
    %v1738 = vunpack.c.h.b16 %v1367
    %v1739 = vunpack.c.l.b16 %v1368
    %v1740 = vunpack.c.h.b16 %v1368
    %v1741 = vunpack.c.l.b16 %v1369
    %v1742 = vunpack.c.h.b16 %v1369
    %v1743 = vunpack.c.l.b16 %v1370
    %v1744 = vunpack.c.h.b16 %v1370
    %v1745 = vunpack.c.l.b16 %v1371
    %v1746 = vunpack.c.h.b16 %v1371
    %v1747 = vunpack.c.l.b16 %v1372
    %v1748 = vunpack.c.h.b16 %v1372
    %v1749 = vunpack.c.l.b16 %v1373
    %v1750 = vunpack.c.h.b16 %v1373
    %v1751 = vunpack.c.l.b16 %v1374
    %v1752 = vunpack.c.h.b16 %v1374
    %v1753 = vunpack.c.l.b16 %v1375
    %v1754 = vunpack.c.h.b16 %v1375
    %v1755 = vunpack.c.l.b16 %v1376
    %v1756 = vunpack.c.h.b16 %v1376
    %v1757 = vunpack.c.l.b16 %v1377
    %v1758 = vunpack.c.h.b16 %v1377
    %v1759 = vunpack.c.l.b16 %v1378
    %v1760 = vunpack.c.h.b16 %v1378
    %v1761 = vunpack.c.l.b16 %v1379
    %v1762 = vunpack.c.h.b16 %v1379
    %v1763 = vunpack.c.l.b16 %v1380
    %v1764 = vunpack.c.h.b16 %v1380
    %v1765 = vunpack.c.l.b16 %v1381
    %v1766 = vunpack.c.h.b16 %v1381
    %v1767 = vunpack.c.l.b16 %v1382
    %v1768 = vunpack.c.h.b16 %v1382
    %v1769 = vunpack.c.l.b16 %v1383
    %v1770 = vunpack.c.h.b16 %v1383
    %v1771 = vunpack.c.l.b16 %v1384
    %v1772 = vunpack.c.h.b16 %v1384
    %v1773 = vunpack.c.l.b16 %v1385
    %v1774 = vunpack.c.h.b16 %v1385
    %v1775 = vunpack.c.l.b16 %v1386
    %v1776 = vunpack.c.h.b16 %v1386
    %v1777 = vunpack.c.l.b16 %v1387
    %v1778 = vunpack.c.h.b16 %v1387
    %v1779 = vunpack.c.l.b16 %v1388
    %v1780 = vunpack.c.h.b16 %v1388
    %v1781 = vunpack.c.l.b16 %v1389
    %v1782 = vunpack.c.h.b16 %v1389
    %v1783 = vunpack.c.l.b16 %v1390
    %v1784 = vunpack.c.h.b16 %v1390
    %v1785 = vunpack.c.l.b16 %v1391
    %v1786 = vunpack.c.h.b16 %v1391
    %v1787 = vunpack.c.l.b16 %v1392
    %v1788 = vunpack.c.h.b16 %v1392
    %v1789 = vunpack.c.l.b16 %v1393
    %v1790 = vunpack.c.h.b16 %v1393
    %v1791 = vunpack.c.l.b16 %v1394
    %v1792 = vunpack.c.h.b16 %v1394
    %v1793 = vunpack.c.l.b16 %v1395
    %v1794 = vunpack.c.h.b16 %v1395
    %v1795 = vunpack.c.l.b16 %v1396
    %v1796 = vunpack.c.h.b16 %v1396
    %v1797 = vunpack.c.l.b16 %v1397
    %v1798 = vunpack.c.h.b16 %v1397
    %v1799 = vunpack.c.l.b16 %v1398
    %v1800 = vunpack.c.h.b16 %v1398
    %v1801 = vunpack.c.l.b16 %v1399
    %v1802 = vunpack.c.h.b16 %v1399
    %v1803 = vunpack.c.l.b16 %v1400
    %v1804 = vunpack.c.h.b16 %v1400
    %v1805 = vunpack.c.l.b16 %v1401
    %v1806 = vunpack.c.h.b16 %v1401
    %v1807 = vunpack.c.l.b16 %v1402
    %v1808 = vunpack.c.h.b16 %v1402
    %v1809 = vpack.c.b16 %v1557, %v1553
    %v1810 = vpack.c.b16 %v1558, %v1554
    %v1811 = vpack.c.b16 %v1559, %v1555
    %v1812 = vpack.c.b16 %v1560, %v1556
    %v1813 = vpack.c.b16 %v1565, %v1561
    %v1814 = vpack.c.b16 %v1566, %v1562
    %v1815 = vpack.c.b16 %v1567, %v1563
    %v1816 = vpack.c.b16 %v1568, %v1564
    %v1817 = vpack.c.b16 %v1573, %v1569
    %v1818 = vpack.c.b16 %v1574, %v1570
    %v1819 = vpack.c.b16 %v1575, %v1571
    %v1820 = vpack.c.b16 %v1576, %v1572
    %v1821 = vpack.c.b16 %v1581, %v1577
    %v1822 = vpack.c.b16 %v1582, %v1578
    %v1823 = vpack.c.b16 %v1583, %v1579
    %v1824 = vpack.c.b16 %v1584, %v1580
    %v1825 = vpack.c.b16 %v1589, %v1585
    %v1826 = vpack.c.b16 %v1590, %v1586
    %v1827 = vpack.c.b16 %v1591, %v1587
    %v1828 = vpack.c.b16 %v1592, %v1588
    %v1829 = vpack.c.b16 %v1597, %v1593
    %v1830 = vpack.c.b16 %v1598, %v1594
    %v1831 = vpack.c.b16 %v1599, %v1595
    %v1832 = vpack.c.b16 %v1600, %v1596
    %v1833 = vpack.c.b16 %v1605, %v1601
    %v1834 = vpack.c.b16 %v1606, %v1602
    %v1835 = vpack.c.b16 %v1607, %v1603
    %v1836 = vpack.c.b16 %v1608, %v1604
    %v1837 = vpack.c.b16 %v1613, %v1609
    %v1838 = vpack.c.b16 %v1614, %v1610
    %v1839 = vpack.c.b16 %v1615, %v1611
    %v1840 = vpack.c.b16 %v1616, %v1612
    %v1841 = vpack.c.b16 %v1621, %v1617
    %v1842 = vpack.c.b16 %v1622, %v1618
    %v1843 = vpack.c.b16 %v1623, %v1619
    %v1844 = vpack.c.b16 %v1624, %v1620
    %v1845 = vpack.c.b16 %v1629, %v1625
    %v1846 = vpack.c.b16 %v1630, %v1626
    %v1847 = vpack.c.b16 %v1631, %v1627
    %v1848 = vpack.c.b16 %v1632, %v1628
    %v1849 = vpack.c.b16 %v1637, %v1633
    %v1850 = vpack.c.b16 %v1638, %v1634
    %v1851 = vpack.c.b16 %v1639, %v1635
    %v1852 = vpack.c.b16 %v1640, %v1636
    %v1853 = vpack.c.b16 %v1645, %v1641
    %v1854 = vpack.c.b16 %v1646, %v1642
    %v1855 = vpack.c.b16 %v1647, %v1643
    %v1856 = vpack.c.b16 %v1648, %v1644
    %v1857 = vpack.c.b16 %v1653, %v1649
    %v1858 = vpack.c.b16 %v1654, %v1650
    %v1859 = vpack.c.b16 %v1655, %v1651
    %v1860 = vpack.c.b16 %v1656, %v1652
    %v1861 = vpack.c.b16 %v1661, %v1657
    %v1862 = vpack.c.b16 %v1662, %v1658
    %v1863 = vpack.c.b16 %v1663, %v1659
    %v1864 = vpack.c.b16 %v1664, %v1660
    %v1865 = vpack.c.b16 %v1669, %v1665
    %v1866 = vpack.c.b16 %v1670, %v1666
    %v1867 = vpack.c.b16 %v1671, %v1667
    %v1868 = vpack.c.b16 %v1672, %v1668
    %v1869 = vpack.c.b16 %v1677, %v1673
    %v1870 = vpack.c.b16 %v1678, %v1674
    %v1871 = vpack.c.b16 %v1679, %v1675
    %v1872 = vpack.c.b16 %v1680, %v1676
    %v1873 = vpack.c.b16 %v1685, %v1681
    %v1874 = vpack.c.b16 %v1686, %v1682
    %v1875 = vpack.c.b16 %v1687, %v1683
    %v1876 = vpack.c.b16 %v1688, %v1684
    %v1877 = vpack.c.b16 %v1693, %v1689
    %v1878 = vpack.c.b16 %v1694, %v1690
    %v1879 = vpack.c.b16 %v1695, %v1691
    %v1880 = vpack.c.b16 %v1696, %v1692
    %v1881 = vpack.c.b16 %v1701, %v1697
    %v1882 = vpack.c.b16 %v1702, %v1698
    %v1883 = vpack.c.b16 %v1703, %v1699
    %v1884 = vpack.c.b16 %v1704, %v1700
    %v1885 = vpack.c.b16 %v1709, %v1705
    %v1886 = vpack.c.b16 %v1710, %v1706
    %v1887 = vpack.c.b16 %v1711, %v1707
    %v1888 = vpack.c.b16 %v1712, %v1708
    %v1889 = vpack.c.b16 %v1717, %v1713
    %v1890 = vpack.c.b16 %v1718, %v1714
    %v1891 = vpack.c.b16 %v1719, %v1715
    %v1892 = vpack.c.b16 %v1720, %v1716
    %v1893 = vpack.c.b16 %v1725, %v1721
    %v1894 = vpack.c.b16 %v1726, %v1722
    %v1895 = vpack.c.b16 %v1727, %v1723
    %v1896 = vpack.c.b16 %v1728, %v1724
    %v1897 = vpack.c.b16 %v1733, %v1729
    %v1898 = vpack.c.b16 %v1734, %v1730
    %v1899 = vpack.c.b16 %v1735, %v1731
    %v1900 = vpack.c.b16 %v1736, %v1732
    %v1901 = vpack.c.b16 %v1741, %v1737
    %v1902 = vpack.c.b16 %v1742, %v1738
    %v1903 = vpack.c.b16 %v1743, %v1739
    %v1904 = vpack.c.b16 %v1744, %v1740
    %v1905 = vpack.c.b16 %v1749, %v1745
    %v1906 = vpack.c.b16 %v1750, %v1746
    %v1907 = vpack.c.b16 %v1751, %v1747
    %v1908 = vpack.c.b16 %v1752, %v1748
    %v1909 = vpack.c.b16 %v1757, %v1753
    %v1910 = vpack.c.b16 %v1758, %v1754
    %v1911 = vpack.c.b16 %v1759, %v1755
    %v1912 = vpack.c.b16 %v1760, %v1756
    %v1913 = vpack.c.b16 %v1765, %v1761
    %v1914 = vpack.c.b16 %v1766, %v1762
    %v1915 = vpack.c.b16 %v1767, %v1763
    %v1916 = vpack.c.b16 %v1768, %v1764
    %v1917 = vpack.c.b16 %v1773, %v1769
    %v1918 = vpack.c.b16 %v1774, %v1770
    %v1919 = vpack.c.b16 %v1775, %v1771
    %v1920 = vpack.c.b16 %v1776, %v1772
    %v1921 = vpack.c.b16 %v1781, %v1777
    %v1922 = vpack.c.b16 %v1782, %v1778
    %v1923 = vpack.c.b16 %v1783, %v1779
    %v1924 = vpack.c.b16 %v1784, %v1780
    %v1925 = vpack.c.b16 %v1789, %v1785
    %v1926 = vpack.c.b16 %v1790, %v1786
    %v1927 = vpack.c.b16 %v1791, %v1787
    %v1928 = vpack.c.b16 %v1792, %v1788
    %v1929 = vpack.c.b16 %v1797, %v1793
    %v1930 = vpack.c.b16 %v1798, %v1794
    %v1931 = vpack.c.b16 %v1799, %v1795
    %v1932 = vpack.c.b16 %v1800, %v1796
    %v1933 = vpack.c.b16 %v1805, %v1801
    %v1934 = vpack.c.b16 %v1806, %v1802
    %v1935 = vpack.c.b16 %v1807, %v1803
    %v1936 = vpack.c.b16 %v1808, %v1804
    %2065 = vmatprep.subr.bf16.mxu0 %v1810
    %2066 = vmatpush1.bf16.msra.mxu0 %v1809
    %2067 = vmatprep.subr.bf16.mxu0 %v1814
    %2068 = vmatpush1.bf16.msra.mxu0 %v1813
    %2069 = vmatprep.subr.bf16.mxu0 %v1818
    %2070 = vmatpush1.bf16.msra.mxu0 %v1817
    %2071 = vmatprep.subr.bf16.mxu0 %v1822
    %2072 = vmatpush1.bf16.msra.mxu0 %v1821
    %2073 = vmatprep.subr.bf16.mxu0 %v1826
    %2074 = vmatpush1.bf16.msra.mxu0 %v1825
    %2075 = vmatprep.subr.bf16.mxu0 %v1830
    %2076 = vmatpush1.bf16.msra.mxu0 %v1829
    %2077 = vmatprep.subr.bf16.mxu0 %v1834
    %2078 = vmatpush1.bf16.msra.mxu0 %v1833
    %2079 = vmatprep.subr.bf16.mxu0 %v1838
    %2080 = vmatpush1.bf16.msra.mxu0 %v1837
    %2081 = vmatprep.subr.bf16.mxu0 %v1842
    %2082 = vmatpush1.bf16.msra.mxu0 %v1841
    %2083 = vmatprep.subr.bf16.mxu0 %v1846
    %2084 = vmatpush1.bf16.msra.mxu0 %v1845
    %2085 = vmatprep.subr.bf16.mxu0 %v1850
    %2086 = vmatpush1.bf16.msra.mxu0 %v1849
    %2087 = vmatprep.subr.bf16.mxu0 %v1854
    %2088 = vmatpush1.bf16.msra.mxu0 %v1853
    %2089 = vmatprep.subr.bf16.mxu0 %v1858
    %2090 = vmatpush1.bf16.msra.mxu0 %v1857
    %2091 = vmatprep.subr.bf16.mxu0 %v1862
    %2092 = vmatpush1.bf16.msra.mxu0 %v1861
    %2093 = vmatprep.subr.bf16.mxu0 %v1866
    %2094 = vmatpush1.bf16.msra.mxu0 %v1865
    %2095 = vmatprep.subr.bf16.mxu0 %v1870
    %2096 = vmatpush1.bf16.msra.mxu0 %v1869
    %2097 = vmatprep.mubr.bf16.mxu0 %v1272
    %2098 = vmatmul.mubr.bf16.gmra.mrb[0].mxu0 %v1271
    %v2099 = vpop.f32.mrb[0].mxu0
    %v2100 = vadd.f32 %v1408, %v2099
    %v2101 = vpop.f32.mrb[0].mxu0
    %v2102 = vadd.f32 %v1412, %v2101
    %v2103 = vpop.f32.mrb[0].mxu0
    %v2104 = vpop.f32.mrb[0].mxu0
    %2105 = vdwg.mxu0
    %2106 = vmatprep.subr.bf16.mxu0 %v1874
    %2107 = vmatpush1.bf16.msra.mxu0 %v1873
    %2108 = vmatprep.subr.bf16.mxu0 %v1878
    %2109 = vmatpush1.bf16.msra.mxu0 %v1877
    %2110 = vmatprep.subr.bf16.mxu0 %v1882
    %2111 = vmatpush1.bf16.msra.mxu0 %v1881
    %2112 = vmatprep.subr.bf16.mxu0 %v1886
    %2113 = vmatpush1.bf16.msra.mxu0 %v1885
    %2114 = vmatprep.subr.bf16.mxu0 %v1890
    %2115 = vmatpush1.bf16.msra.mxu0 %v1889
    %2116 = vmatprep.subr.bf16.mxu0 %v1894
    %2117 = vmatpush1.bf16.msra.mxu0 %v1893
    %2118 = vmatprep.subr.bf16.mxu0 %v1898
    %2119 = vmatpush1.bf16.msra.mxu0 %v1897
    %2120 = vmatprep.subr.bf16.mxu0 %v1902
    %2121 = vmatpush1.bf16.msra.mxu0 %v1901
    %2122 = vmatprep.subr.bf16.mxu0 %v1906
    %2123 = vmatpush1.bf16.msra.mxu0 %v1905
    %2124 = vmatprep.subr.bf16.mxu0 %v1910
    %2125 = vmatpush1.bf16.msra.mxu0 %v1909
    %2126 = vmatprep.subr.bf16.mxu0 %v1914
    %2127 = vmatpush1.bf16.msra.mxu0 %v1913
    %2128 = vmatprep.subr.bf16.mxu0 %v1918
    %2129 = vmatpush1.bf16.msra.mxu0 %v1917
    %2130 = vmatprep.subr.bf16.mxu0 %v1922
    %2131 = vmatpush1.bf16.msra.mxu0 %v1921
    %2132 = vmatprep.subr.bf16.mxu0 %v1926
    %2133 = vmatpush1.bf16.msra.mxu0 %v1925
    %2134 = vmatprep.subr.bf16.mxu0 %v1930
    %2135 = vmatpush1.bf16.msra.mxu0 %v1929
    %2136 = vmatprep.subr.bf16.mxu0 %v1934
    %2137 = vmatpush1.bf16.msra.mxu0 %v1933
    %2138 = vmatprep.mubr.bf16.mxu0 %v1274
    %2139 = vmatmul.mubr.bf16.gmra.mrb[0].mxu0 %v1273
    %v2140 = vpop.f32.mrb[0].mxu0
    %v2141 = vadd.f32 %v2100, %v2140
    %v2142 = vpop.f32.mrb[0].mxu0
    %v2143 = vadd.f32 %v2102, %v2142
    %v2144 = vpop.f32.mrb[0].mxu0
    %v2145 = vpop.f32.mrb[0].mxu0
    %2146 = vdwg.mxu0
    %2147 = vmatprep.subr.bf16.mxu0 %v1812
    %2148 = vmatpush1.bf16.msra.mxu0 %v1811
    %2149 = vmatprep.subr.bf16.mxu0 %v1816
    %2150 = vmatpush1.bf16.msra.mxu0 %v1815
    %2151 = vmatprep.subr.bf16.mxu0 %v1820
    %2152 = vmatpush1.bf16.msra.mxu0 %v1819
    %2153 = vmatprep.subr.bf16.mxu0 %v1824
    %2154 = vmatpush1.bf16.msra.mxu0 %v1823
    %2155 = vmatprep.subr.bf16.mxu0 %v1828
    %2156 = vmatpush1.bf16.msra.mxu0 %v1827
    %2157 = vmatprep.subr.bf16.mxu0 %v1832
    %2158 = vmatpush1.bf16.msra.mxu0 %v1831
    %2159 = vmatprep.subr.bf16.mxu0 %v1836
    %2160 = vmatpush1.bf16.msra.mxu0 %v1835
    %2161 = vmatprep.subr.bf16.mxu0 %v1840
    %2162 = vmatpush1.bf16.msra.mxu0 %v1839
    %2163 = vmatprep.subr.bf16.mxu0 %v1844
    %2164 = vmatpush1.bf16.msra.mxu0 %v1843
    %2165 = vmatprep.subr.bf16.mxu0 %v1848
    %2166 = vmatpush1.bf16.msra.mxu0 %v1847
    %2167 = vmatprep.subr.bf16.mxu0 %v1852
    %2168 = vmatpush1.bf16.msra.mxu0 %v1851
    %2169 = vmatprep.subr.bf16.mxu0 %v1856
    %2170 = vmatpush1.bf16.msra.mxu0 %v1855
    %2171 = vmatprep.subr.bf16.mxu0 %v1860
    %2172 = vmatpush1.bf16.msra.mxu0 %v1859
    %2173 = vmatprep.subr.bf16.mxu0 %v1864
    %2174 = vmatpush1.bf16.msra.mxu0 %v1863
    %2175 = vmatprep.subr.bf16.mxu0 %v1868
    %2176 = vmatpush1.bf16.msra.mxu0 %v1867
    %2177 = vmatprep.subr.bf16.mxu0 %v1872
    %2178 = vmatpush1.bf16.msra.mxu0 %v1871
    %2179 = vmatprep.mubr.bf16.mxu0 %v1272
    %2180 = vmatmul.mubr.bf16.gmra.mrb[0].mxu0 %v1271
    %v2181 = vpop.f32.mrb[0].mxu0
    %v2182 = vadd.f32 %v1416, %v2181
    %v2183 = vpop.f32.mrb[0].mxu0
    %v2184 = vadd.f32 %v1420, %v2183
    %v2185 = vpop.f32.mrb[0].mxu0
    %v2186 = vpop.f32.mrb[0].mxu0
    %2187 = vdwg.mxu0
    %2188 = vmatprep.subr.bf16.mxu0 %v1876
    %2189 = vmatpush1.bf16.msra.mxu0 %v1875
    %2190 = vmatprep.subr.bf16.mxu0 %v1880
    %2191 = vmatpush1.bf16.msra.mxu0 %v1879
    %2192 = vmatprep.subr.bf16.mxu0 %v1884
    %2193 = vmatpush1.bf16.msra.mxu0 %v1883
    %2194 = vmatprep.subr.bf16.mxu0 %v1888
    %2195 = vmatpush1.bf16.msra.mxu0 %v1887
    %2196 = vmatprep.subr.bf16.mxu0 %v1892
    %2197 = vmatpush1.bf16.msra.mxu0 %v1891
    %2198 = vmatprep.subr.bf16.mxu0 %v1896
    %2199 = vmatpush1.bf16.msra.mxu0 %v1895
    %2200 = vmatprep.subr.bf16.mxu0 %v1900
    %2201 = vmatpush1.bf16.msra.mxu0 %v1899
    %2202 = vmatprep.subr.bf16.mxu0 %v1904
    %2203 = vmatpush1.bf16.msra.mxu0 %v1903
    %2204 = vmatprep.subr.bf16.mxu0 %v1908
    %2205 = vmatpush1.bf16.msra.mxu0 %v1907
    %2206 = vmatprep.subr.bf16.mxu0 %v1912
    %2207 = vmatpush1.bf16.msra.mxu0 %v1911
    %2208 = vmatprep.subr.bf16.mxu0 %v1916
    %2209 = vmatpush1.bf16.msra.mxu0 %v1915
    %2210 = vmatprep.subr.bf16.mxu0 %v1920
    %2211 = vmatpush1.bf16.msra.mxu0 %v1919
    %2212 = vmatprep.subr.bf16.mxu0 %v1924
    %2213 = vmatpush1.bf16.msra.mxu0 %v1923
    %2214 = vmatprep.subr.bf16.mxu0 %v1928
    %2215 = vmatpush1.bf16.msra.mxu0 %v1927
    %2216 = vmatprep.subr.bf16.mxu0 %v1932
    %2217 = vmatpush1.bf16.msra.mxu0 %v1931
    %2218 = vmatprep.subr.bf16.mxu0 %v1936
    %2219 = vmatpush1.bf16.msra.mxu0 %v1935
    %2220 = vmatprep.mubr.bf16.mxu0 %v1274
    %2221 = vmatmul.mubr.bf16.gmra.mrb[0].mxu0 %v1273
    %v2222 = vpop.f32.mrb[0].mxu0
    %v2223 = vadd.f32 %v2182, %v2222
    %v2224 = vpop.f32.mrb[0].mxu0
    %v2225 = vadd.f32 %v2184, %v2224
    %v2226 = vpop.f32.mrb[0].mxu0
    %v2227 = vpop.f32.mrb[0].mxu0
    %2228 = vdwg.mxu0
    %v2229 = vmax.f32 %v2141, 0.0
    %v2230 = vmax.f32 %v2143, 0.0
    %v2231 = vmax.f32 %v2223, 0.0
    %v2232 = vmax.f32 %v2225, 0.0
    %v2233 = vpack.c.bf16 %v2229, %v2229
    %v2234 = vpack.c.bf16 %v2230, %v2230
    %v2235 = vpack.c.bf16 %v2231, %v2231
    %v2236 = vpack.c.bf16 %v2232, %v2232
    %v2237 = vld [vmem:[#allocation10] sm:$0xf]
    %v2238 = vld [vmem:[#allocation10 + $0x4] sm:$0xf]
    %v2239 = vld [vmem:[#allocation10 + $0x8] sm:$0xf]
    %v2240 = vld [vmem:[#allocation10 + $0xc] sm:$0xf]
    %v2241 = vld [vmem:[#allocation10 + $0x10] sm:$0xf]
    %v2242 = vld [vmem:[#allocation10 + $0x14] sm:$0xf]
    %v2243 = vld [vmem:[#allocation10 + $0x18] sm:$0xf]
    %v2244 = vld [vmem:[#allocation10 + $0x1c] sm:$0xf]
    %v2245 = vld [vmem:[#allocation10 + $0x20] sm:$0xf]
    %v2246 = vld [vmem:[#allocation10 + $0x24] sm:$0xf]
    %v2247 = vld [vmem:[#allocation10 + $0x28] sm:$0xf]
    %v2248 = vld [vmem:[#allocation10 + $0x2c] sm:$0xf]
    %v2249 = vld [vmem:[#allocation10 + $0x30] sm:$0xf]
    %v2250 = vld [vmem:[#allocation10 + $0x34] sm:$0xf]
    %v2251 = vld [vmem:[#allocation10 + $0x38] sm:$0xf]
    %v2252 = vld [vmem:[#allocation10 + $0x3c] sm:$0xf]
    %v2253 = vld [vmem:[#allocation10 + $0x40] sm:$0xf]
    %v2254 = vld [vmem:[#allocation10 + $0x44] sm:$0xf]
    %v2255 = vld [vmem:[#allocation10 + $0x48] sm:$0xf]
    %v2256 = vld [vmem:[#allocation10 + $0x4c] sm:$0xf]
    %v2257 = vld [vmem:[#allocation10 + $0x50] sm:$0xf]
    %v2258 = vld [vmem:[#allocation10 + $0x54] sm:$0xf]
    %v2259 = vld [vmem:[#allocation10 + $0x58] sm:$0xf]
    %v2260 = vld [vmem:[#allocation10 + $0x5c] sm:$0xf]
    %v2261 = vld [vmem:[#allocation10 + $0x60] sm:$0xf]
    %v2262 = vld [vmem:[#allocation10 + $0x64] sm:$0xf]
    %v2263 = vld [vmem:[#allocation10 + $0x68] sm:$0xf]
    %v2264 = vld [vmem:[#allocation10 + $0x6c] sm:$0xf]
    %v2265 = vld [vmem:[#allocation10 + $0x70] sm:$0xf]
    %v2266 = vld [vmem:[#allocation10 + $0x74] sm:$0xf]
    %v2267 = vld [vmem:[#allocation10 + $0x78] sm:$0xf]
    %v2268 = vld [vmem:[#allocation10 + $0x7c] sm:$0xf]
    %v2269 = vld [vmem:[#allocation10 + $0x80] sm:$0xf]
    %v2270 = vld [vmem:[#allocation10 + $0x84] sm:$0xf]
    %v2271 = vld [vmem:[#allocation10 + $0x88] sm:$0xf]
    %v2272 = vld [vmem:[#allocation10 + $0x8c] sm:$0xf]
    %v2273 = vld [vmem:[#allocation10 + $0x90] sm:$0xf]
    %v2274 = vld [vmem:[#allocation10 + $0x94] sm:$0xf]
    %v2275 = vld [vmem:[#allocation10 + $0x98] sm:$0xf]
    %v2276 = vld [vmem:[#allocation10 + $0x9c] sm:$0xf]
    %v2277 = vld [vmem:[#allocation10 + $0xa0] sm:$0xf]
    %v2278 = vld [vmem:[#allocation10 + $0xa4] sm:$0xf]
    %v2279 = vld [vmem:[#allocation10 + $0xa8] sm:$0xf]
    %v2280 = vld [vmem:[#allocation10 + $0xac] sm:$0xf]
    %v2281 = vld [vmem:[#allocation10 + $0xb0] sm:$0xf]
    %v2282 = vld [vmem:[#allocation10 + $0xb4] sm:$0xf]
    %v2283 = vld [vmem:[#allocation10 + $0xb8] sm:$0xf]
    %v2284 = vld [vmem:[#allocation10 + $0xbc] sm:$0xf]
    %v2285 = vld [vmem:[#allocation10 + $0xc0] sm:$0xf]
    %v2286 = vld [vmem:[#allocation10 + $0xc4] sm:$0xf]
    %v2287 = vld [vmem:[#allocation10 + $0xc8] sm:$0xf]
    %v2288 = vld [vmem:[#allocation10 + $0xcc] sm:$0xf]
    %v2289 = vld [vmem:[#allocation10 + $0xd0] sm:$0xf]
    %v2290 = vld [vmem:[#allocation10 + $0xd4] sm:$0xf]
    %v2291 = vld [vmem:[#allocation10 + $0xd8] sm:$0xf]
    %v2292 = vld [vmem:[#allocation10 + $0xdc] sm:$0xf]
    %v2293 = vld [vmem:[#allocation10 + $0xe0] sm:$0xf]
    %v2294 = vld [vmem:[#allocation10 + $0xe4] sm:$0xf]
    %v2295 = vld [vmem:[#allocation10 + $0xe8] sm:$0xf]
    %v2296 = vld [vmem:[#allocation10 + $0xec] sm:$0xf]
    %v2297 = vld [vmem:[#allocation10 + $0xf0] sm:$0xf]
    %v2298 = vld [vmem:[#allocation10 + $0xf4] sm:$0xf]
    %v2299 = vld [vmem:[#allocation10 + $0xf8] sm:$0xf]
    %v2300 = vld [vmem:[#allocation10 + $0xfc] sm:$0xf]
    %v2301 = vld [vmem:[%s8] sm:$0x1]
    %v2303 = vlaneseq
    %v2304 = vshrl.u32 %v2303, 7
    %v2305 = vsub.s32 0, %v2304
    %v2306 = vrot.slane %v2301, %v2305
    %v2372 = vunpack.c.l.b16 %v2237
    %v2373 = vunpack.c.l.b16 %v2238
    %v2374 = vunpack.c.l.b16 %v2239
    %v2375 = vunpack.c.l.b16 %v2240
    %v2376 = vunpack.c.l.b16 %v2241
    %v2377 = vunpack.c.l.b16 %v2242
    %v2378 = vunpack.c.l.b16 %v2243
    %v2379 = vunpack.c.l.b16 %v2244
    %v2380 = vunpack.c.l.b16 %v2245
    %v2381 = vunpack.c.l.b16 %v2246
    %v2382 = vunpack.c.l.b16 %v2247
    %v2383 = vunpack.c.l.b16 %v2248
    %v2384 = vunpack.c.l.b16 %v2249
    %v2385 = vunpack.c.l.b16 %v2250
    %v2386 = vunpack.c.l.b16 %v2251
    %v2387 = vunpack.c.l.b16 %v2252
    %v2388 = vunpack.c.l.b16 %v2253
    %v2389 = vunpack.c.l.b16 %v2254
    %v2390 = vunpack.c.l.b16 %v2255
    %v2391 = vunpack.c.l.b16 %v2256
    %v2392 = vunpack.c.l.b16 %v2257
    %v2393 = vunpack.c.l.b16 %v2258
    %v2394 = vunpack.c.l.b16 %v2259
    %v2395 = vunpack.c.l.b16 %v2260
    %v2396 = vunpack.c.l.b16 %v2261
    %v2397 = vunpack.c.l.b16 %v2262
    %v2398 = vunpack.c.l.b16 %v2263
    %v2399 = vunpack.c.l.b16 %v2264
    %v2400 = vunpack.c.l.b16 %v2265
    %v2401 = vunpack.c.l.b16 %v2266
    %v2402 = vunpack.c.l.b16 %v2267
    %v2403 = vunpack.c.l.b16 %v2268
    %v2404 = vunpack.c.l.b16 %v2269
    %v2405 = vunpack.c.l.b16 %v2270
    %v2406 = vunpack.c.l.b16 %v2271
    %v2407 = vunpack.c.l.b16 %v2272
    %v2408 = vunpack.c.l.b16 %v2273
    %v2409 = vunpack.c.l.b16 %v2274
    %v2410 = vunpack.c.l.b16 %v2275
    %v2411 = vunpack.c.l.b16 %v2276
    %v2412 = vunpack.c.l.b16 %v2277
    %v2413 = vunpack.c.l.b16 %v2278
    %v2414 = vunpack.c.l.b16 %v2279
    %v2415 = vunpack.c.l.b16 %v2280
    %v2416 = vunpack.c.l.b16 %v2281
    %v2417 = vunpack.c.l.b16 %v2282
    %v2418 = vunpack.c.l.b16 %v2283
    %v2419 = vunpack.c.l.b16 %v2284
    %v2420 = vunpack.c.l.b16 %v2285
    %v2421 = vunpack.c.l.b16 %v2286
    %v2422 = vunpack.c.l.b16 %v2287
    %v2423 = vunpack.c.l.b16 %v2288
    %v2424 = vunpack.c.l.b16 %v2289
    %v2425 = vunpack.c.l.b16 %v2290
    %v2426 = vunpack.c.l.b16 %v2291
    %v2427 = vunpack.c.l.b16 %v2292
    %v2428 = vunpack.c.l.b16 %v2293
    %v2429 = vunpack.c.l.b16 %v2294
    %v2430 = vunpack.c.l.b16 %v2295
    %v2431 = vunpack.c.l.b16 %v2296
    %v2432 = vunpack.c.l.b16 %v2297
    %v2433 = vunpack.c.l.b16 %v2298
    %v2434 = vunpack.c.l.b16 %v2299
    %v2435 = vunpack.c.l.b16 %v2300
    %v2436 = vpack.c.b16 %v2373, %v2372
    %v2437 = vpack.c.b16 %v2375, %v2374
    %v2438 = vpack.c.b16 %v2377, %v2376
    %v2439 = vpack.c.b16 %v2379, %v2378
    %v2440 = vpack.c.b16 %v2381, %v2380
    %v2441 = vpack.c.b16 %v2383, %v2382
    %v2442 = vpack.c.b16 %v2385, %v2384
    %v2443 = vpack.c.b16 %v2387, %v2386
    %v2444 = vpack.c.b16 %v2389, %v2388
    %v2445 = vpack.c.b16 %v2391, %v2390
    %v2446 = vpack.c.b16 %v2393, %v2392
    %v2447 = vpack.c.b16 %v2395, %v2394
    %v2448 = vpack.c.b16 %v2397, %v2396
    %v2449 = vpack.c.b16 %v2399, %v2398
    %v2450 = vpack.c.b16 %v2401, %v2400
    %v2451 = vpack.c.b16 %v2403, %v2402
    %v2452 = vpack.c.b16 %v2405, %v2404
    %v2453 = vpack.c.b16 %v2407, %v2406
    %v2454 = vpack.c.b16 %v2409, %v2408
    %v2455 = vpack.c.b16 %v2411, %v2410
    %v2456 = vpack.c.b16 %v2413, %v2412
    %v2457 = vpack.c.b16 %v2415, %v2414
    %v2458 = vpack.c.b16 %v2417, %v2416
    %v2459 = vpack.c.b16 %v2419, %v2418
    %v2460 = vpack.c.b16 %v2421, %v2420
    %v2461 = vpack.c.b16 %v2423, %v2422
    %v2462 = vpack.c.b16 %v2425, %v2424
    %v2463 = vpack.c.b16 %v2427, %v2426
    %v2464 = vpack.c.b16 %v2429, %v2428
    %v2465 = vpack.c.b16 %v2431, %v2430
    %v2466 = vpack.c.b16 %v2433, %v2432
    %v2467 = vpack.c.b16 %v2435, %v2434
    %2500 = vmatprep.subr.bf16.mxu0 0
    %2501 = vmatpush1.bf16.msra.mxu0 %v2436
    %2502 = vmatprep.subr.bf16.mxu0 0
    %2503 = vmatpush1.bf16.msra.mxu0 %v2437
    %2504 = vmatprep.subr.bf16.mxu0 0
    %2505 = vmatpush1.bf16.msra.mxu0 %v2438
    %2506 = vmatprep.subr.bf16.mxu0 0
    %2507 = vmatpush1.bf16.msra.mxu0 %v2439
    %2508 = vmatprep.subr.bf16.mxu0 0
    %2509 = vmatpush1.bf16.msra.mxu0 %v2440
    %2510 = vmatprep.subr.bf16.mxu0 0
    %2511 = vmatpush1.bf16.msra.mxu0 %v2441
    %2512 = vmatprep.subr.bf16.mxu0 0
    %2513 = vmatpush1.bf16.msra.mxu0 %v2442
    %2514 = vmatprep.subr.bf16.mxu0 0
    %2515 = vmatpush1.bf16.msra.mxu0 %v2443
    %2516 = vmatprep.subr.bf16.mxu0 0
    %2517 = vmatpush1.bf16.msra.mxu0 %v2444
    %2518 = vmatprep.subr.bf16.mxu0 0
    %2519 = vmatpush1.bf16.msra.mxu0 %v2445
    %2520 = vmatprep.subr.bf16.mxu0 0
    %2521 = vmatpush1.bf16.msra.mxu0 %v2446
    %2522 = vmatprep.subr.bf16.mxu0 0
    %2523 = vmatpush1.bf16.msra.mxu0 %v2447
    %2524 = vmatprep.subr.bf16.mxu0 0
    %2525 = vmatpush1.bf16.msra.mxu0 %v2448
    %2526 = vmatprep.subr.bf16.mxu0 0
    %2527 = vmatpush1.bf16.msra.mxu0 %v2449
    %2528 = vmatprep.subr.bf16.mxu0 0
    %2529 = vmatpush1.bf16.msra.mxu0 %v2450
    %2530 = vmatprep.subr.bf16.mxu0 0
    %2531 = vmatpush1.bf16.msra.mxu0 %v2451
    %2532 = vmatprep.mubr.bf16.mxu0 %v2234
    %2533 = vmatmul.mubr.bf16.gmra.mrb[0].mxu0 %v2233
    %v2534 = vpop.f32.mrb[0].mxu0
    %v2535 = vadd.f32 %v2306, %v2534
    %v2536 = vpop.f32.mrb[0].mxu0
    %v2537 = vpop.f32.mrb[0].mxu0
    %v2538 = vpop.f32.mrb[0].mxu0
    %2539 = vdwg.mxu0
    %2540 = vmatprep.subr.bf16.mxu0 0
    %2541 = vmatpush1.bf16.msra.mxu0 %v2452
    %2542 = vmatprep.subr.bf16.mxu0 0
    %2543 = vmatpush1.bf16.msra.mxu0 %v2453
    %2544 = vmatprep.subr.bf16.mxu0 0
    %2545 = vmatpush1.bf16.msra.mxu0 %v2454
    %2546 = vmatprep.subr.bf16.mxu0 0
    %2547 = vmatpush1.bf16.msra.mxu0 %v2455
    %2548 = vmatprep.subr.bf16.mxu0 0
    %2549 = vmatpush1.bf16.msra.mxu0 %v2456
    %2550 = vmatprep.subr.bf16.mxu0 0
    %2551 = vmatpush1.bf16.msra.mxu0 %v2457
    %2552 = vmatprep.subr.bf16.mxu0 0
    %2553 = vmatpush1.bf16.msra.mxu0 %v2458
    %2554 = vmatprep.subr.bf16.mxu0 0
    %2555 = vmatpush1.bf16.msra.mxu0 %v2459
    %2556 = vmatprep.subr.bf16.mxu0 0
    %2557 = vmatpush1.bf16.msra.mxu0 %v2460
    %2558 = vmatprep.subr.bf16.mxu0 0
    %2559 = vmatpush1.bf16.msra.mxu0 %v2461
    %2560 = vmatprep.subr.bf16.mxu0 0
    %2561 = vmatpush1.bf16.msra.mxu0 %v2462
    %2562 = vmatprep.subr.bf16.mxu0 0
    %2563 = vmatpush1.bf16.msra.mxu0 %v2463
    %2564 = vmatprep.subr.bf16.mxu0 0
    %2565 = vmatpush1.bf16.msra.mxu0 %v2464
    %2566 = vmatprep.subr.bf16.mxu0 0
    %2567 = vmatpush1.bf16.msra.mxu0 %v2465
    %2568 = vmatprep.subr.bf16.mxu0 0
    %2569 = vmatpush1.bf16.msra.mxu0 %v2466
    %2570 = vmatprep.subr.bf16.mxu0 0
    %2571 = vmatpush1.bf16.msra.mxu0 %v2467
    %2572 = vmatprep.mubr.bf16.mxu0 %v2236
    %2573 = vmatmul.mubr.bf16.gmra.mrb[0].mxu0 %v2235
    %v2574 = vpop.f32.mrb[0].mxu0
    %v2575 = vadd.f32 %v2535, %v2574
    %v2576 = vpop.f32.mrb[0].mxu0
    %v2577 = vpop.f32.mrb[0].mxu0
    %v2578 = vpop.f32.mrb[0].mxu0
    %2579 = vdwg.mxu0
    %2580 = vst [vmem:[#allocation11] sm:$0xff] %v2575
    // Predicated region
    $region58: #{tpu_custom_call.1} parent=1 // pred_check
      _
    $region59: #{tpu_custom_call.1} parent=1 // pred_check_branch
      %2582 = sbr.rel (0) target = $region61
    $region60: #{tpu_custom_call.1} parent=1 // pred_region
      %s2584 = ssub.s32 128, 128
      %2585 = vsyncadd [#allocation4], %s2584
      %s2587 = sshll.u32 [#allocation11], 4
      %s2588 = int_to_ptr.vmem [resolvable:$true] %s2587
      %2590 = dma.vmem_to_hbm [thread:$0]  %s2588, 128, %s9, [#allocation4]
    $region61: #{tpu_custom_call.1} parent=1 // pred_fallthru
      _
    // Predicated region
    $region62: #{tpu_custom_call.1} parent=1 // pred_check
      _
    $region63: #{tpu_custom_call.1} parent=1 // pred_check_branch
      %2592 = sbr.rel (0) target = $region65
    $region64: #{tpu_custom_call.1} parent=1 // pred_region
      %2593 = dma.done [#allocation4], 128
    $region65: #{tpu_custom_call.1} parent=1 // pred_fallthru
      _
    %2594 = vsyncpa [#allocation3], 1
    %2595 = vsyncpa [#allocation6], 1
    %2596 = vsyncpa [#allocation9], 1
    %2597 = vsyncpa [#allocation4], 1

</llo_original>
